<compile_context>
chip_gen: v7x
topology: tpu7x:2x2x1
jax: 0.10.0
libtpu: 0.0.40
codegen_flags: <defaults>
</compile_context>

<pallas_src>
import jax
import jax.numpy as jnp
from jax import lax
from jax.experimental import pallas as pl
from jax.experimental.pallas import tpu as pltpu

LRN_SIZE = 5
LRN_ALPHA = 2e-4
LRN_BETA = 0.75
LRN_K = 1.0

# Conv dilations in the "a trous" formulation (doubles after each s=2 pool).
_CONV_DILATIONS = (1, 2, 4, 8, 8, 8)
_FINAL_STRIDE = 8  # product of the three stride-2 pools


# ---------------------------------------------------------------------------
# fused kernel: all six blocks, batch folded into lanes
# ---------------------------------------------------------------------------
def _deepecg_kernel(x_ref, w_ref, b_ref, o_ref):
    def shift_left(y, s):
        # y'[:, m] = y[:, m + s], zero fill on the right (static slice+concat).
        if s == 0:
            return y
        pad = jnp.zeros((y.shape[0], s), jnp.float32)
        return jnp.concatenate([y[:, s:], pad], axis=1)

    def conv_relu(y, layer, dil):
        # Dilated valid Conv1d(k=3) + bias + ReLU as one MXU matmul covering
        # the whole batch: (H, 3*C_in) @ (3*C_in, N*L).
        c_in = y.shape[0]
        stacked = jnp.concatenate(
            [shift_left(y, k * dil) for k in range(3)], axis=0)     # (3*C_in, N*L)
        w = w_ref[layer][:, :3 * c_in]                              # (H, 3*C_in)
        out = jnp.dot(w, stacked, preferred_element_type=jnp.float32)
        out = out + b_ref[layer]                                    # (H,1) broadcast
        return jnp.maximum(out, 0.0)

    def lrn(y):
        # nn.LocalResponseNorm(size=5, alpha=2e-4, beta=0.75, k=1): channel
        # (sublane) window sum of squares; x^-0.75 via rsqrt/sqrt (EUP slot).
        c = y.shape[0]
        sq = y * y
        zpad = jnp.zeros((2, y.shape[1]), jnp.float32)
        sp = jnp.concatenate([zpad, sq, zpad], axis=0)              # (C+4, N*L)
        win = (sp[0:c] + sp[1:c + 1] + sp[2:c + 2]
               + sp[3:c + 3] + sp[4:c + 4])
        d = LRN_K + (LRN_ALPHA / LRN_SIZE) * win                    # >= 1, safe
        return y * lax.rsqrt(d * jnp.sqrt(d))                       # d ** -0.75

    y = x_ref[...]                                                  # (C_in, N*L)
    # block_1: conv + relu               (maxpool k1 s2 -> dilation doubles)
    y = conv_relu(y, 0, _CONV_DILATIONS[0])
    # block_2: conv + relu + LRN         (maxpool k1 s2 -> dilation doubles)
    y = lrn(conv_relu(y, 1, _CONV_DILATIONS[1]))
    # block_3: conv + relu + maxpool k3 s2 (3-way dilated max; s2 -> dilation doubles)
    d3 = _CONV_DILATIONS[2]
    y = conv_relu(y, 2, d3)
    y = jnp.maximum(jnp.maximum(y, shift_left(y, d3)), shift_left(y, 2 * d3))
    # block_4: conv + relu + LRN
    y = lrn(conv_relu(y, 3, _CONV_DILATIONS[3]))
    # block_5: conv + relu
    y = conv_relu(y, 4, _CONV_DILATIONS[4])
    # block_6: conv + relu + LRN
    # TODO(synk): nn.Dropout(0.5) is identity in eval mode and cannot affect the
    # (shape-only) module return value, so it is not materialized.
    y = lrn(conv_relu(y, 5, _CONV_DILATIONS[5]))
    o_ref[...] = y                                                  # lane-dense slab


# ---------------------------------------------------------------------------
# host-side wrapper
# ---------------------------------------------------------------------------
def _final_length(l):
    l = l - 2; l = (l - 1) // 2 + 1      # block_1: conv k3, maxpool k1 s2
    l = l - 2; l = (l - 1) // 2 + 1      # block_2: conv k3, maxpool k1 s2
    l = l - 2; l = (l - 3) // 2 + 1      # block_3: conv k3, maxpool k3 s2
    return l - 2 - 2 - 2                 # blocks 4..6: conv k3 each


def pack_params(params):
    """One-time im2col weight packing, kept OUT of the forward path."""
    h = params["w1"].shape[0]
    ws, bs = [], []
    for i in range(1, 7):
        w = params[f"w{i}"]                                   # (H, C_in_i, 3)
        c_out, c_in_i, _ = w.shape
        # column index = k*C_in + c (must match kernel stacking order)
        w2d = jnp.transpose(w, (0, 2, 1)).reshape(c_out, 3 * c_in_i)
        w2d = jnp.pad(w2d, ((0, 0), (0, 3 * h - 3 * c_in_i)))  # zero-pad layer 1
        ws.append(w2d)
        bs.append(params[f"b{i}"].reshape(c_out, 1))
    return (jnp.stack(ws).astype(jnp.float32),                 # (6, H, 3H)
            jnp.stack(bs).astype(jnp.float32))                 # (6, H, 1)


@jax.jit
def _forward_impl(x, w_packed, b_packed):
    n, c_in, l = x.shape
    h = w_packed.shape[1]
    l_out = _final_length(l)
    # Fold batch into lanes: (N, C_in, L) -> (C_in, N*L).
    x2d = jnp.transpose(x, (1, 0, 2)).reshape(c_in, n * l).astype(jnp.float32)
    out = pl.pallas_call(
        _deepecg_kernel,
        out_shape=jax.ShapeDtypeStruct((h, n * l), jnp.float32),
        grid=(1,),
        in_specs=[
            pl.BlockSpec((c_in, n * l), lambda i: (0, 0)),
            pl.BlockSpec((6, h, 3 * h), lambda i: (0, 0, 0)),
            pl.BlockSpec((6, h, 1), lambda i: (0, 0, 0)),
        ],
        out_specs=pl.BlockSpec((h, n * l), lambda i: (0, 0)),
        compiler_params=pltpu.CompilerParams(
            dimension_semantics=("arbitrary",)),
    )(x2d, w_packed, b_packed)
    # Unfold the batch and apply the single deferred stride-8 decimation
    # (cheap XLA slice inside the same jit; columns past the valid prefix are
    # garbage by construction and are dropped here).
    act = jnp.transpose(out.reshape(h, n, l), (1, 0, 2))         # (N, H, L)
    return act[:, :, :_FINAL_STRIDE * l_out:_FINAL_STRIDE]       # (N, H, L_out)


def deepecg_dummy_forward(x, w_packed, b_packed):
    _, _, l = x.shape
    assert _final_length(l) >= 1, "sequence too short for this network"
    act = _forward_impl(x, w_packed, b_packed)
    # The PyTorch module returns final_act.shape[1] * final_act.shape[2].
    return act.shape[1] * act.shape[2], act


# ---------------------------------------------------------------------------
# parameter init (follows nn.Conv1d default init shapes/bounds)
# ---------------------------------------------------------------------------
def init_params(key, input_shape, hidden_units):
    params = {}
    c_prev = input_shape
    for i in range(1, 7):
        key, kw, kb = jax.random.split(key, 3)
        fan_in = c_prev * 3
        bound = 1.0 / float(fan_in) ** 0.5
        params[f"w{i}"] = jax.random.uniform(
            kw, (hidden_units, c_prev, 3), jnp.float32, -bound, bound)
        params[f"b{i}"] = jax.random.uniform(
            kb, (hidden_units,), jnp.float32, -bound, bound)
        c_prev = hidden_units
    return params


# ---------------------------------------------------------------------------
# pure-jnp reference of the PyTorch module (eval mode) for correctness check
# ---------------------------------------------------------------------------
def _reference_forward(x, params):
    def conv_relu(x, w, b):
        l_c = x.shape[-1] - 2
        y = sum(jnp.einsum("oc,ncl->nol", w[:, :, k], x[:, :, k:k + l_c])
                for k in range(3))
        return jnp.maximum(y + b[None, :, None], 0.0)

    def lrn(y):
        c = y.shape[1]
        sq = jnp.pad(y * y, ((0, 0), (2, 2), (0, 0)))
        win = sum(sq[:, k:k + c, :] for k in range(LRN_SIZE))
        return y / (LRN_K + (LRN_ALPHA / LRN_SIZE) * win) ** LRN_BETA

    y = conv_relu(x, params["w1"], params["b1"])[:, :, ::2]
    y = lrn(conv_relu(y, params["w2"], params["b2"]))[:, :, ::2]
    y = conv_relu(y, params["w3"], params["b3"])
    y = jnp.maximum(jnp.maximum(y[:, :, :-2], y[:, :, 1:-1]), y[:, :, 2:])[:, :, ::2]
    y = lrn(conv_relu(y, params["w4"], params["b4"]))
    y = conv_relu(y, params["w5"], params["b5"])
    y = lrn(conv_relu(y, params["w6"], params["b6"]))
    return y


if __name__ == "__main__":
    key = jax.random.PRNGKey(0)
    key, xk = jax.random.split(key)

    batch, input_shape, hidden_units, seq_len = 2, 4, 32, 128
    x = jax.random.normal(xk, (batch, input_shape, seq_len), jnp.float32)
    params = init_params(key, input_shape, hidden_units)

    # One-time packing (outside the forward / timing path).
    w_packed, b_packed = pack_params(params)

    out_scalar, act = deepecg_dummy_forward(x, w_packed, b_packed)
    jax.block_until_ready(act)

    # Shape trace: 128 ->126->63 ->61->31 ->29->14 ->12 ->10 ->8 ; 32 * 8 == 256
    assert act.shape == (batch, hidden_units, 8), act.shape
    assert out_scalar == hidden_units * 8

    ref = _reference_forward(x, params)
    err = float(jnp.max(jnp.abs(act - ref)))
    tol = 1e-2 * (1.0 + float(jnp.max(jnp.abs(ref))))
    assert err <= tol, f"kernel/reference mismatch: max|diff|={err}, tol={tol}"

    print("KERNEL_OK")
</pallas_src>

<mosaic_0001>
module attributes {stable_mosaic.version = 11 : i64} {
  func.func @_deepecg_kernel(%arg0: i32, %arg1: memref<4x256xf32, #tpu.memory_space<vmem>>, %arg2: memref<6x32x96xf32, #tpu.memory_space<vmem>>, %arg3: memref<6x32x1xf32, #tpu.memory_space<vmem>>, %arg4: memref<32x256xf32, #tpu.memory_space<vmem>>) attributes {dimension_semantics = [#tpu.dimension_semantics<arbitrary>], iteration_bounds = array<i64: 1>, scalar_prefetch = 0 : i64, scratch_operands = 0 : i64, tpu.core_type = #tpu.core_type<tc>, window_params = [{pipeline_mode = #tpu.pipeline_mode<synchronous>, transform_indices = @transform_0, window_bounds = array<i64: 4, 256>}, {pipeline_mode = #tpu.pipeline_mode<synchronous>, transform_indices = @transform_1, window_bounds = array<i64: 6, 32, 96>}, {pipeline_mode = #tpu.pipeline_mode<synchronous>, transform_indices = @transform_2, window_bounds = array<i64: 6, 32, 1>}, {pipeline_mode = #tpu.pipeline_mode<synchronous>, transform_indices = @transform_3, window_bounds = array<i64: 32, 256>}]} {
    %c0 = arith.constant 0 : index
    %c0_0 = arith.constant 0 : index
    %0 = vector.load %arg1[%c0, %c0_0] : memref<4x256xf32, #tpu.memory_space<vmem>>, vector<4x256xf32>
    %cst = arith.constant 0.000000e+00 : f32
    %1 = vector.broadcast %cst : f32 to vector<4x1xf32>
    %2 = vector.extract_strided_slice %0 {offsets = [0, 1], sizes = [4, 255], strides = [1, 1]} : vector<4x256xf32> to vector<4x255xf32>
    %3 = tpu.concatenate %2, %1 in 1 : vector<4x255xf32>, vector<4x1xf32> -> vector<4x256xf32>
    %cst_1 = arith.constant 0.000000e+00 : f32
    %4 = vector.broadcast %cst_1 : f32 to vector<4x2xf32>
    %5 = vector.extract_strided_slice %0 {offsets = [0, 2], sizes = [4, 254], strides = [1, 1]} : vector<4x256xf32> to vector<4x254xf32>
    %6 = tpu.concatenate %5, %4 in 1 : vector<4x254xf32>, vector<4x2xf32> -> vector<4x256xf32>
    %7 = tpu.concatenate %0, %3, %6 in 0 : vector<4x256xf32>, vector<4x256xf32>, vector<4x256xf32> -> vector<12x256xf32>
    %c0_2 = arith.constant 0 : index
    %c0_3 = arith.constant 0 : index
    %c0_4 = arith.constant 0 : index
    %8 = vector.load %arg2[%c0_2, %c0_3, %c0_4] : memref<6x32x96xf32, #tpu.memory_space<vmem>>, vector<1x32x96xf32>
    %9 = vector.shape_cast %8 : vector<1x32x96xf32> to vector<32x96xf32>
    %10 = vector.extract_strided_slice %9 {offsets = [0, 0], sizes = [32, 12], strides = [1, 1]} : vector<32x96xf32> to vector<32x12xf32>
    %cst_5 = arith.constant dense<0.000000e+00> : vector<32x256xf32>
    %11 = tpu.matmul %10, %7, %cst_5 {dimension_numbers = #tpu.dot_dimension_numbers<[1], [0], [0], [1], [0, 0, 1, 1], [], []>} : vector<32x12xf32>, vector<12x256xf32>, vector<32x256xf32> -> vector<32x256xf32>
    %c0_6 = arith.constant 0 : index
    %c0_7 = arith.constant 0 : index
    %c0_8 = arith.constant 0 : index
    %12 = vector.load %arg3[%c0_6, %c0_7, %c0_8] : memref<6x32x1xf32, #tpu.memory_space<vmem>>, vector<1x32x1xf32>
    %13 = vector.shape_cast %12 : vector<1x32x1xf32> to vector<32x1xf32>
    %14 = vector.broadcast %13 : vector<32x1xf32> to vector<32x256xf32>
    %15 = arith.addf %11, %14 : vector<32x256xf32>
    %cst_9 = arith.constant 0.000000e+00 : f32
    %16 = vector.broadcast %cst_9 : f32 to vector<32x256xf32>
    %17 = arith.maximumf %15, %16 : vector<32x256xf32>
    %cst_10 = arith.constant 0.000000e+00 : f32
    %18 = vector.broadcast %cst_10 : f32 to vector<32x2xf32>
    %19 = vector.extract_strided_slice %17 {offsets = [0, 2], sizes = [32, 254], strides = [1, 1]} : vector<32x256xf32> to vector<32x254xf32>
    %20 = tpu.concatenate %19, %18 in 1 : vector<32x254xf32>, vector<32x2xf32> -> vector<32x256xf32>
    %cst_11 = arith.constant 0.000000e+00 : f32
    %21 = vector.broadcast %cst_11 : f32 to vector<32x4xf32>
    %22 = vector.extract_strided_slice %17 {offsets = [0, 4], sizes = [32, 252], strides = [1, 1]} : vector<32x256xf32> to vector<32x252xf32>
    %23 = tpu.concatenate %22, %21 in 1 : vector<32x252xf32>, vector<32x4xf32> -> vector<32x256xf32>
    %24 = tpu.concatenate %17, %20, %23 in 0 : vector<32x256xf32>, vector<32x256xf32>, vector<32x256xf32> -> vector<96x256xf32>
    %c1 = arith.constant 1 : index
    %c0_12 = arith.constant 0 : index
    %c0_13 = arith.constant 0 : index
    %25 = vector.load %arg2[%c1, %c0_12, %c0_13] : memref<6x32x96xf32, #tpu.memory_space<vmem>>, vector<1x32x96xf32>
    %26 = vector.shape_cast %25 : vector<1x32x96xf32> to vector<32x96xf32>
    %cst_14 = arith.constant dense<0.000000e+00> : vector<32x256xf32>
    %27 = tpu.matmul %26, %24, %cst_14 {dimension_numbers = #tpu.dot_dimension_numbers<[1], [0], [0], [1], [0, 0, 1, 1], [], []>} : vector<32x96xf32>, vector<96x256xf32>, vector<32x256xf32> -> vector<32x256xf32>
    %c1_15 = arith.constant 1 : index
    %c0_16 = arith.constant 0 : index
    %c0_17 = arith.constant 0 : index
    %28 = vector.load %arg3[%c1_15, %c0_16, %c0_17] : memref<6x32x1xf32, #tpu.memory_space<vmem>>, vector<1x32x1xf32>
    %29 = vector.shape_cast %28 : vector<1x32x1xf32> to vector<32x1xf32>
    %30 = vector.broadcast %29 : vector<32x1xf32> to vector<32x256xf32>
    %31 = arith.addf %27, %30 : vector<32x256xf32>
    %cst_18 = arith.constant 0.000000e+00 : f32
    %32 = vector.broadcast %cst_18 : f32 to vector<32x256xf32>
    %33 = arith.maximumf %31, %32 : vector<32x256xf32>
    %34 = arith.mulf %33, %33 : vector<32x256xf32>
    %cst_19 = arith.constant 0.000000e+00 : f32
    %35 = vector.broadcast %cst_19 : f32 to vector<2x256xf32>
    %36 = tpu.concatenate %35, %34, %35 in 0 : vector<2x256xf32>, vector<32x256xf32>, vector<2x256xf32> -> vector<36x256xf32>
    %37 = vector.extract_strided_slice %36 {offsets = [0, 0], sizes = [32, 256], strides = [1, 1]} : vector<36x256xf32> to vector<32x256xf32>
    %38 = vector.extract_strided_slice %36 {offsets = [1, 0], sizes = [32, 256], strides = [1, 1]} : vector<36x256xf32> to vector<32x256xf32>
    %39 = arith.addf %37, %38 : vector<32x256xf32>
    %40 = vector.extract_strided_slice %36 {offsets = [2, 0], sizes = [32, 256], strides = [1, 1]} : vector<36x256xf32> to vector<32x256xf32>
    %41 = arith.addf %39, %40 : vector<32x256xf32>
    %42 = vector.extract_strided_slice %36 {offsets = [3, 0], sizes = [32, 256], strides = [1, 1]} : vector<36x256xf32> to vector<32x256xf32>
    %43 = arith.addf %41, %42 : vector<32x256xf32>
    %44 = vector.extract_strided_slice %36 {offsets = [4, 0], sizes = [32, 256], strides = [1, 1]} : vector<36x256xf32> to vector<32x256xf32>
    %45 = arith.addf %43, %44 : vector<32x256xf32>
    %cst_20 = arith.constant 4.000000e-05 : f32
    %46 = vector.broadcast %cst_20 : f32 to vector<32x256xf32>
    %47 = arith.mulf %46, %45 : vector<32x256xf32>
    %cst_21 = arith.constant 1.000000e+00 : f32
    %48 = vector.broadcast %cst_21 : f32 to vector<32x256xf32>
    %49 = arith.addf %48, %47 : vector<32x256xf32>
    %50 = math.sqrt %49 : vector<32x256xf32>
    %51 = arith.mulf %49, %50 : vector<32x256xf32>
    %52 = math.rsqrt %51 : vector<32x256xf32>
    %53 = arith.mulf %33, %52 : vector<32x256xf32>
    %cst_22 = arith.constant 0.000000e+00 : f32
    %54 = vector.broadcast %cst_22 : f32 to vector<32x4xf32>
    %55 = vector.extract_strided_slice %53 {offsets = [0, 4], sizes = [32, 252], strides = [1, 1]} : vector<32x256xf32> to vector<32x252xf32>
    %56 = tpu.concatenate %55, %54 in 1 : vector<32x252xf32>, vector<32x4xf32> -> vector<32x256xf32>
    %cst_23 = arith.constant 0.000000e+00 : f32
    %57 = vector.broadcast %cst_23 : f32 to vector<32x8xf32>
    %58 = vector.extract_strided_slice %53 {offsets = [0, 8], sizes = [32, 248], strides = [1, 1]} : vector<32x256xf32> to vector<32x248xf32>
    %59 = tpu.concatenate %58, %57 in 1 : vector<32x248xf32>, vector<32x8xf32> -> vector<32x256xf32>
    %60 = tpu.concatenate %53, %56, %59 in 0 : vector<32x256xf32>, vector<32x256xf32>, vector<32x256xf32> -> vector<96x256xf32>
    %c2 = arith.constant 2 : index
    %c0_24 = arith.constant 0 : index
    %c0_25 = arith.constant 0 : index
    %61 = vector.load %arg2[%c2, %c0_24, %c0_25] : memref<6x32x96xf32, #tpu.memory_space<vmem>>, vector<1x32x96xf32>
    %62 = vector.shape_cast %61 : vector<1x32x96xf32> to vector<32x96xf32>
    %cst_26 = arith.constant dense<0.000000e+00> : vector<32x256xf32>
    %63 = tpu.matmul %62, %60, %cst_26 {dimension_numbers = #tpu.dot_dimension_numbers<[1], [0], [0], [1], [0, 0, 1, 1], [], []>} : vector<32x96xf32>, vector<96x256xf32>, vector<32x256xf32> -> vector<32x256xf32>
    %c2_27 = arith.constant 2 : index
    %c0_28 = arith.constant 0 : index
    %c0_29 = arith.constant 0 : index
    %64 = vector.load %arg3[%c2_27, %c0_28, %c0_29] : memref<6x32x1xf32, #tpu.memory_space<vmem>>, vector<1x32x1xf32>
    %65 = vector.shape_cast %64 : vector<1x32x1xf32> to vector<32x1xf32>
    %66 = vector.broadcast %65 : vector<32x1xf32> to vector<32x256xf32>
    %67 = arith.addf %63, %66 : vector<32x256xf32>
    %cst_30 = arith.constant 0.000000e+00 : f32
    %68 = vector.broadcast %cst_30 : f32 to vector<32x256xf32>
    %69 = arith.maximumf %67, %68 : vector<32x256xf32>
    %cst_31 = arith.constant 0.000000e+00 : f32
    %70 = vector.broadcast %cst_31 : f32 to vector<32x4xf32>
    %71 = vector.extract_strided_slice %69 {offsets = [0, 4], sizes = [32, 252], strides = [1, 1]} : vector<32x256xf32> to vector<32x252xf32>
    %72 = tpu.concatenate %71, %70 in 1 : vector<32x252xf32>, vector<32x4xf32> -> vector<32x256xf32>
    %73 = arith.maximumf %69, %72 : vector<32x256xf32>
    %cst_32 = arith.constant 0.000000e+00 : f32
    %74 = vector.broadcast %cst_32 : f32 to vector<32x8xf32>
    %75 = vector.extract_strided_slice %69 {offsets = [0, 8], sizes = [32, 248], strides = [1, 1]} : vector<32x256xf32> to vector<32x248xf32>
    %76 = tpu.concatenate %75, %74 in 1 : vector<32x248xf32>, vector<32x8xf32> -> vector<32x256xf32>
    %77 = arith.maximumf %73, %76 : vector<32x256xf32>
    %cst_33 = arith.constant 0.000000e+00 : f32
    %78 = vector.broadcast %cst_33 : f32 to vector<32x8xf32>
    %79 = vector.extract_strided_slice %77 {offsets = [0, 8], sizes = [32, 248], strides = [1, 1]} : vector<32x256xf32> to vector<32x248xf32>
    %80 = tpu.concatenate %79, %78 in 1 : vector<32x248xf32>, vector<32x8xf32> -> vector<32x256xf32>
    %cst_34 = arith.constant 0.000000e+00 : f32
    %81 = vector.broadcast %cst_34 : f32 to vector<32x16xf32>
    %82 = vector.extract_strided_slice %77 {offsets = [0, 16], sizes = [32, 240], strides = [1, 1]} : vector<32x256xf32> to vector<32x240xf32>
    %83 = tpu.concatenate %82, %81 in 1 : vector<32x240xf32>, vector<32x16xf32> -> vector<32x256xf32>
    %84 = tpu.concatenate %77, %80, %83 in 0 : vector<32x256xf32>, vector<32x256xf32>, vector<32x256xf32> -> vector<96x256xf32>
    %c3 = arith.constant 3 : index
    %c0_35 = arith.constant 0 : index
    %c0_36 = arith.constant 0 : index
    %85 = vector.load %arg2[%c3, %c0_35, %c0_36] : memref<6x32x96xf32, #tpu.memory_space<vmem>>, vector<1x32x96xf32>
    %86 = vector.shape_cast %85 : vector<1x32x96xf32> to vector<32x96xf32>
    %cst_37 = arith.constant dense<0.000000e+00> : vector<32x256xf32>
    %87 = tpu.matmul %86, %84, %cst_37 {dimension_numbers = #tpu.dot_dimension_numbers<[1], [0], [0], [1], [0, 0, 1, 1], [], []>} : vector<32x96xf32>, vector<96x256xf32>, vector<32x256xf32> -> vector<32x256xf32>
    %c3_38 = arith.constant 3 : index
    %c0_39 = arith.constant 0 : index
    %c0_40 = arith.constant 0 : index
    %88 = vector.load %arg3[%c3_38, %c0_39, %c0_40] : memref<6x32x1xf32, #tpu.memory_space<vmem>>, vector<1x32x1xf32>
    %89 = vector.shape_cast %88 : vector<1x32x1xf32> to vector<32x1xf32>
    %90 = vector.broadcast %89 : vector<32x1xf32> to vector<32x256xf32>
    %91 = arith.addf %87, %90 : vector<32x256xf32>
    %cst_41 = arith.constant 0.000000e+00 : f32
    %92 = vector.broadcast %cst_41 : f32 to vector<32x256xf32>
    %93 = arith.maximumf %91, %92 : vector<32x256xf32>
    %94 = arith.mulf %93, %93 : vector<32x256xf32>
    %cst_42 = arith.constant 0.000000e+00 : f32
    %95 = vector.broadcast %cst_42 : f32 to vector<2x256xf32>
    %96 = tpu.concatenate %95, %94, %95 in 0 : vector<2x256xf32>, vector<32x256xf32>, vector<2x256xf32> -> vector<36x256xf32>
    %97 = vector.extract_strided_slice %96 {offsets = [0, 0], sizes = [32, 256], strides = [1, 1]} : vector<36x256xf32> to vector<32x256xf32>
    %98 = vector.extract_strided_slice %96 {offsets = [1, 0], sizes = [32, 256], strides = [1, 1]} : vector<36x256xf32> to vector<32x256xf32>
    %99 = arith.addf %97, %98 : vector<32x256xf32>
    %100 = vector.extract_strided_slice %96 {offsets = [2, 0], sizes = [32, 256], strides = [1, 1]} : vector<36x256xf32> to vector<32x256xf32>
    %101 = arith.addf %99, %100 : vector<32x256xf32>
    %102 = vector.extract_strided_slice %96 {offsets = [3, 0], sizes = [32, 256], strides = [1, 1]} : vector<36x256xf32> to vector<32x256xf32>
    %103 = arith.addf %101, %102 : vector<32x256xf32>
    %104 = vector.extract_strided_slice %96 {offsets = [4, 0], sizes = [32, 256], strides = [1, 1]} : vector<36x256xf32> to vector<32x256xf32>
    %105 = arith.addf %103, %104 : vector<32x256xf32>
    %cst_43 = arith.constant 4.000000e-05 : f32
    %106 = vector.broadcast %cst_43 : f32 to vector<32x256xf32>
    %107 = arith.mulf %106, %105 : vector<32x256xf32>
    %cst_44 = arith.constant 1.000000e+00 : f32
    %108 = vector.broadcast %cst_44 : f32 to vector<32x256xf32>
    %109 = arith.addf %108, %107 : vector<32x256xf32>
    %110 = math.sqrt %109 : vector<32x256xf32>
    %111 = arith.mulf %109, %110 : vector<32x256xf32>
    %112 = math.rsqrt %111 : vector<32x256xf32>
    %113 = arith.mulf %93, %112 : vector<32x256xf32>
    %cst_45 = arith.constant 0.000000e+00 : f32
    %114 = vector.broadcast %cst_45 : f32 to vector<32x8xf32>
    %115 = vector.extract_strided_slice %113 {offsets = [0, 8], sizes = [32, 248], strides = [1, 1]} : vector<32x256xf32> to vector<32x248xf32>
    %116 = tpu.concatenate %115, %114 in 1 : vector<32x248xf32>, vector<32x8xf32> -> vector<32x256xf32>
    %cst_46 = arith.constant 0.000000e+00 : f32
    %117 = vector.broadcast %cst_46 : f32 to vector<32x16xf32>
    %118 = vector.extract_strided_slice %113 {offsets = [0, 16], sizes = [32, 240], strides = [1, 1]} : vector<32x256xf32> to vector<32x240xf32>
    %119 = tpu.concatenate %118, %117 in 1 : vector<32x240xf32>, vector<32x16xf32> -> vector<32x256xf32>
    %120 = tpu.concatenate %113, %116, %119 in 0 : vector<32x256xf32>, vector<32x256xf32>, vector<32x256xf32> -> vector<96x256xf32>
    %c4 = arith.constant 4 : index
    %c0_47 = arith.constant 0 : index
    %c0_48 = arith.constant 0 : index
    %121 = vector.load %arg2[%c4, %c0_47, %c0_48] : memref<6x32x96xf32, #tpu.memory_space<vmem>>, vector<1x32x96xf32>
    %122 = vector.shape_cast %121 : vector<1x32x96xf32> to vector<32x96xf32>
    %cst_49 = arith.constant dense<0.000000e+00> : vector<32x256xf32>
    %123 = tpu.matmul %122, %120, %cst_49 {dimension_numbers = #tpu.dot_dimension_numbers<[1], [0], [0], [1], [0, 0, 1, 1], [], []>} : vector<32x96xf32>, vector<96x256xf32>, vector<32x256xf32> -> vector<32x256xf32>
    %c4_50 = arith.constant 4 : index
    %c0_51 = arith.constant 0 : index
    %c0_52 = arith.constant 0 : index
    %124 = vector.load %arg3[%c4_50, %c0_51, %c0_52] : memref<6x32x1xf32, #tpu.memory_space<vmem>>, vector<1x32x1xf32>
    %125 = vector.shape_cast %124 : vector<1x32x1xf32> to vector<32x1xf32>
    %126 = vector.broadcast %125 : vector<32x1xf32> to vector<32x256xf32>
    %127 = arith.addf %123, %126 : vector<32x256xf32>
    %cst_53 = arith.constant 0.000000e+00 : f32
    %128 = vector.broadcast %cst_53 : f32 to vector<32x256xf32>
    %129 = arith.maximumf %127, %128 : vector<32x256xf32>
    %cst_54 = arith.constant 0.000000e+00 : f32
    %130 = vector.broadcast %cst_54 : f32 to vector<32x8xf32>
    %131 = vector.extract_strided_slice %129 {offsets = [0, 8], sizes = [32, 248], strides = [1, 1]} : vector<32x256xf32> to vector<32x248xf32>
    %132 = tpu.concatenate %131, %130 in 1 : vector<32x248xf32>, vector<32x8xf32> -> vector<32x256xf32>
    %cst_55 = arith.constant 0.000000e+00 : f32
    %133 = vector.broadcast %cst_55 : f32 to vector<32x16xf32>
    %134 = vector.extract_strided_slice %129 {offsets = [0, 16], sizes = [32, 240], strides = [1, 1]} : vector<32x256xf32> to vector<32x240xf32>
    %135 = tpu.concatenate %134, %133 in 1 : vector<32x240xf32>, vector<32x16xf32> -> vector<32x256xf32>
    %136 = tpu.concatenate %129, %132, %135 in 0 : vector<32x256xf32>, vector<32x256xf32>, vector<32x256xf32> -> vector<96x256xf32>
    %c5 = arith.constant 5 : index
    %c0_56 = arith.constant 0 : index
    %c0_57 = arith.constant 0 : index
    %137 = vector.load %arg2[%c5, %c0_56, %c0_57] : memref<6x32x96xf32, #tpu.memory_space<vmem>>, vector<1x32x96xf32>
    %138 = vector.shape_cast %137 : vector<1x32x96xf32> to vector<32x96xf32>
    %cst_58 = arith.constant dense<0.000000e+00> : vector<32x256xf32>
    %139 = tpu.matmul %138, %136, %cst_58 {dimension_numbers = #tpu.dot_dimension_numbers<[1], [0], [0], [1], [0, 0, 1, 1], [], []>} : vector<32x96xf32>, vector<96x256xf32>, vector<32x256xf32> -> vector<32x256xf32>
    %c5_59 = arith.constant 5 : index
    %c0_60 = arith.constant 0 : index
    %c0_61 = arith.constant 0 : index
    %140 = vector.load %arg3[%c5_59, %c0_60, %c0_61] : memref<6x32x1xf32, #tpu.memory_space<vmem>>, vector<1x32x1xf32>
    %141 = vector.shape_cast %140 : vector<1x32x1xf32> to vector<32x1xf32>
    %142 = vector.broadcast %141 : vector<32x1xf32> to vector<32x256xf32>
    %143 = arith.addf %139, %142 : vector<32x256xf32>
    %cst_62 = arith.constant 0.000000e+00 : f32
    %144 = vector.broadcast %cst_62 : f32 to vector<32x256xf32>
    %145 = arith.maximumf %143, %144 : vector<32x256xf32>
    %146 = arith.mulf %145, %145 : vector<32x256xf32>
    %cst_63 = arith.constant 0.000000e+00 : f32
    %147 = vector.broadcast %cst_63 : f32 to vector<2x256xf32>
    %148 = tpu.concatenate %147, %146, %147 in 0 : vector<2x256xf32>, vector<32x256xf32>, vector<2x256xf32> -> vector<36x256xf32>
    %149 = vector.extract_strided_slice %148 {offsets = [0, 0], sizes = [32, 256], strides = [1, 1]} : vector<36x256xf32> to vector<32x256xf32>
    %150 = vector.extract_strided_slice %148 {offsets = [1, 0], sizes = [32, 256], strides = [1, 1]} : vector<36x256xf32> to vector<32x256xf32>
    %151 = arith.addf %149, %150 : vector<32x256xf32>
    %152 = vector.extract_strided_slice %148 {offsets = [2, 0], sizes = [32, 256], strides = [1, 1]} : vector<36x256xf32> to vector<32x256xf32>
    %153 = arith.addf %151, %152 : vector<32x256xf32>
    %154 = vector.extract_strided_slice %148 {offsets = [3, 0], sizes = [32, 256], strides = [1, 1]} : vector<36x256xf32> to vector<32x256xf32>
    %155 = arith.addf %153, %154 : vector<32x256xf32>
    %156 = vector.extract_strided_slice %148 {offsets = [4, 0], sizes = [32, 256], strides = [1, 1]} : vector<36x256xf32> to vector<32x256xf32>
    %157 = arith.addf %155, %156 : vector<32x256xf32>
    %cst_64 = arith.constant 4.000000e-05 : f32
    %158 = vector.broadcast %cst_64 : f32 to vector<32x256xf32>
    %159 = arith.mulf %158, %157 : vector<32x256xf32>
    %cst_65 = arith.constant 1.000000e+00 : f32
    %160 = vector.broadcast %cst_65 : f32 to vector<32x256xf32>
    %161 = arith.addf %160, %159 : vector<32x256xf32>
    %162 = math.sqrt %161 : vector<32x256xf32>
    %163 = arith.mulf %161, %162 : vector<32x256xf32>
    %164 = math.rsqrt %163 : vector<32x256xf32>
    %165 = arith.mulf %145, %164 : vector<32x256xf32>
    %c0_66 = arith.constant 0 : index
    %c0_67 = arith.constant 0 : index
    %166 = vector.load %arg4[%c0_66, %c0_67] : memref<32x256xf32, #tpu.memory_space<vmem>>, vector<32x256xf32>
    tpu.vector_store %arg4[%c0_66, %c0_67], %165 {strides = array<i32>} : memref<32x256xf32, #tpu.memory_space<vmem>>, vector<32x256xf32>,
    return
  }
  func.func @transform_0(%arg0: i32) -> (i32, i32) {
    %c0_i32 = arith.constant 0 : i32
    %c0_i32_0 = arith.constant 0 : i32
    %c0_i32_1 = arith.constant 0 : i32
    return %c0_i32, %c0_i32_0 : i32, i32
  }
  func.func @transform_1(%arg0: i32) -> (i32, i32, i32) {
    %c0_i32 = arith.constant 0 : i32
    %c0_i32_0 = arith.constant 0 : i32
    %c0_i32_1 = arith.constant 0 : i32
    %c0_i32_2 = arith.constant 0 : i32
    return %c0_i32, %c0_i32_0, %c0_i32_1 : i32, i32, i32
  }
  func.func @transform_2(%arg0: i32) -> (i32, i32, i32) {
    %c0_i32 = arith.constant 0 : i32
    %c0_i32_0 = arith.constant 0 : i32
    %c0_i32_1 = arith.constant 0 : i32
    %c0_i32_2 = arith.constant 0 : i32
    return %c0_i32, %c0_i32_0, %c0_i32_1 : i32, i32, i32
  }
  func.func @transform_3(%arg0: i32) -> (i32, i32) {
    %c0_i32 = arith.constant 0 : i32
    %c0_i32_0 = arith.constant 0 : i32
    %c0_i32_1 = arith.constant 0 : i32
    return %c0_i32, %c0_i32_0 : i32, i32
  }
}

</mosaic_0001>

<llo_original>
// kernel: _forward_impl.1
$region0: #{_forward_impl.1}
  #allocation0 [shape = 'u32[]', space=smem, size = 0x4, offset = 0x4, fixed_abs, tag = 'smem constant byte address 0x4 - core index']
  #allocation1 [shape = 'u32[144,128]{1,0:T(1,128)}', space=vmem, size = 0x12000, scoped, tag = 'internal scratch']
  %s0 = inlined_call_operand.vmem [shape: f32[4,256], index: 0, kind: input, shape index: {}]
  %s1 = inlined_call_operand.vmem [shape: f32[6,32,96], index: 1, kind: input, shape index: {}]
  %s2 = inlined_call_operand.vmem [shape: f32[6,32,1], index: 2, kind: input, shape index: {}]
  %s3 = inlined_call_operand.vmem [shape: f32[32,256], index: 3, kind: output, shape index: {}]
  %s4 = sld [smem:[#allocation0]]
  $region22: #{_forward_impl.1} parent=0
    _
  %s6 = ssub.s32 1, %s4
  %s7 = scalar_select 0, %s6, %s4
  // Predicated region
  $region2: #{_forward_impl.1} parent=0 // pred_check
    _
  $region3: #{_forward_impl.1} parent=0 // pred_check_branch
    %9 = sbr.rel (0) target = $region5
  $region4: #{_forward_impl.1} parent=0 // pred_region
    _
  $region5: #{_forward_impl.1} parent=0 // pred_fallthru
    _
  // Predicated region
  $region6: #{_forward_impl.1} parent=0 // pred_check
    _
  $region7: #{_forward_impl.1} parent=0 // pred_check_branch
    %11 = sbr.rel (0) target = $region9
  $region8: #{_forward_impl.1} parent=0 // pred_region
    _
  $region9: #{_forward_impl.1} parent=0 // pred_fallthru
    _
  // Predicated region
  $region10: #{_forward_impl.1} parent=0 // pred_check
    _
  $region11: #{_forward_impl.1} parent=0 // pred_check_branch
    %13 = sbr.rel (0) target = $region13
  $region12: #{_forward_impl.1} parent=0 // pred_region
    _
  $region13: #{_forward_impl.1} parent=0 // pred_fallthru
    _
  %v14 = vld [vmem:[%s0] sm:$0xff]
  %v16 = vcombine.high %v14, %v14
  %17 = vrot.lane.b32.xlu0 %v14, 127
  %v18 = vpop.permute.xlu0 %17
  %19 = vrot.lane.b32.xlu0 %v16, 127
  %v20 = vpop.permute.xlu0 %19
  %vm21 = vcmask 1039360
  %v22 = vsel %vm21, %v18, %v20
  %v24 = vsel %vm21, %v20, 0.0
  %25 = vrot.lane.b32.xlu0 %v14, 126
  %v26 = vpop.permute.xlu0 %25
  %27 = vrot.lane.b32.xlu0 %v16, 126
  %v28 = vpop.permute.xlu0 %27
  %vm29 = vcmask 1031168
  %v30 = vsel %vm29, %v26, %v28
  %v32 = vsel %vm29, %v28, 0.0
  %v35 = vrot.slane %v22, 4
  %v36 = vrot.slane %v24, 4
  %vm39 = vcmask 1043456
  %v40 = vsel %vm39, %v14, %v35
  %v41 = vsel %vm39, %v16, %v36
  %v42 = vld [vmem:[%s1] sm:$0xff]
  %v43 = vld [vmem:[%s1 + $0x8] sm:$0xff]
  %v44 = vld [vmem:[%s1 + $0x10] sm:$0xff]
  %v45 = vld [vmem:[%s1 + $0x18] sm:$0xff]
  %v46 = vld [vmem:[%s2] sm:$0xff]
  %v47 = vld [vmem:[%s2 + $0x8] sm:$0xff]
  %v48 = vld [vmem:[%s2 + $0x10] sm:$0xff]
  %v49 = vld [vmem:[%s2 + $0x18] sm:$0xff]
  %51 = vset.pattern.permute.xlu0 0
  %52 = vperm.xlu0 %51, %v46
  %v53 = vpop.permute.xlu0 %52
  %56 = vset.pattern.permute.xlu0 0
  %57 = vperm.xlu0 %56, %v47
  %v58 = vpop.permute.xlu0 %57
  %61 = vset.pattern.permute.xlu0 0
  %62 = vperm.xlu0 %61, %v48
  %v63 = vpop.permute.xlu0 %62
  %66 = vset.pattern.permute.xlu0 0
  %67 = vperm.xlu0 %66, %v49
  %v68 = vpop.permute.xlu0 %67
  %vm70 = vcmask 97280
  %v72 = vsel %vm70, %v42, 0
  %v75 = vsel %vm70, %v43, 0
  %v78 = vsel %vm70, %v44, 0
  %v81 = vsel %vm70, %v45, 0
  %v83 = vsel %vm39, %v30, 0
  %v86 = vsel %vm39, %v32, 0
  %88 = vmatprep.subr.mxu0 %v41
  %89 = vmatpush1.msra.mxu0 %v40
  %90 = vmatprep.subr.mxu0 %v86
  %91 = vmatpush1.msra.mxu0 %v83
  %92 = vmatprep.subr.mxu0 0.0
  %93 = vmatpush1.msra.mxu0 0.0
  %94 = vmatprep.subr.mxu0 0.0
  %95 = vmatpush1.msra.mxu0 0.0
  %96 = vmatprep.subr.mxu0 0.0
  %97 = vmatpush1.msra.mxu0 0.0
  %98 = vmatprep.subr.mxu0 0.0
  %99 = vmatpush1.msra.mxu0 0.0
  %100 = vmatprep.subr.mxu0 0.0
  %101 = vmatpush1.msra.mxu0 0.0
  %102 = vmatprep.subr.mxu0 0.0
  %103 = vmatpush1.msra.mxu0 0.0
  %104 = vmatprep.subr.mxu0 0.0
  %105 = vmatpush1.msra.mxu0 0.0
  %106 = vmatprep.subr.mxu0 0.0
  %107 = vmatpush1.msra.mxu0 0.0
  %108 = vmatprep.subr.mxu0 0.0
  %109 = vmatpush1.msra.mxu0 0.0
  %110 = vmatprep.subr.mxu0 0.0
  %111 = vmatpush1.msra.mxu0 0.0
  %112 = vmatprep.subr.mxu0 0.0
  %113 = vmatpush1.msra.mxu0 0.0
  %114 = vmatprep.subr.mxu0 0.0
  %115 = vmatpush1.msra.mxu0 0.0
  %116 = vmatprep.subr.mxu0 0.0
  %117 = vmatpush1.msra.mxu0 0.0
  %118 = vmatprep.subr.mxu0 0.0
  %119 = vmatpush1.msra.mxu0 0.0
  %120 = vmatprep.subr.mxu0 0.0
  %121 = vmatpush1.msra.mxu0 0.0
  %122 = vmatprep.subr.mxu0 0.0
  %123 = vmatpush1.msra.mxu0 0.0
  %124 = vmatprep.subr.mxu0 0.0
  %125 = vmatpush1.msra.mxu0 0.0
  %126 = vmatprep.subr.mxu0 0.0
  %127 = vmatpush1.msra.mxu0 0.0
  %128 = vmatprep.subr.mxu0 0.0
  %129 = vmatpush1.msra.mxu0 0.0
  %130 = vmatprep.subr.mxu0 0.0
  %131 = vmatpush1.msra.mxu0 0.0
  %132 = vmatprep.subr.mxu0 0.0
  %133 = vmatpush1.msra.mxu0 0.0
  %134 = vmatprep.subr.mxu0 0.0
  %135 = vmatpush1.msra.mxu0 0.0
  %136 = vmatprep.subr.mxu0 0.0
  %137 = vmatpush1.msra.mxu0 0.0
  %138 = vmatprep.subr.mxu0 0.0
  %139 = vmatpush1.msra.mxu0 0.0
  %140 = vmatprep.subr.mxu0 0.0
  %141 = vmatpush1.msra.mxu0 0.0
  %142 = vmatprep.subr.mxu0 0.0
  %143 = vmatpush1.msra.mxu0 0.0
  %144 = vmatprep.subr.mxu0 0.0
  %145 = vmatpush1.msra.mxu0 0.0
  %146 = vmatprep.subr.mxu0 0.0
  %147 = vmatpush1.msra.mxu0 0.0
  %148 = vmatprep.subr.mxu0 0.0
  %149 = vmatpush1.msra.mxu0 0.0
  %150 = vmatprep.subr.mxu0 0.0
  %151 = vmatpush1.msra.mxu0 0.0
  %152 = vmatprep.mubr.f32.mxu0 0.0
  %153 = vmatmul.mubr.f32.gmra.mrb[0].mxu0 %v72
  %v154 = vpop.f32.mrb[0].mxu0
  %v155 = vadd.f32 %v53, %v154
  %v156 = vpop.f32.mrb[0].mxu0
  %v157 = vadd.f32 %v53, %v156
  %158 = vmatprep.mubr.f32.mxu0 0.0
  %159 = vmatmul.mubr.f32.gmra.mrb[0].mxu0 %v75
  %v160 = vpop.f32.mrb[0].mxu0
  %v161 = vadd.f32 %v58, %v160
  %v162 = vpop.f32.mrb[0].mxu0
  %v163 = vadd.f32 %v58, %v162
  %164 = vmatprep.mubr.f32.mxu0 0.0
  %165 = vmatmul.mubr.f32.gmra.mrb[0].mxu0 %v78
  %v166 = vpop.f32.mrb[0].mxu0
  %v167 = vadd.f32 %v63, %v166
  %v168 = vpop.f32.mrb[0].mxu0
  %v169 = vadd.f32 %v63, %v168
  %170 = vmatprep.mubr.f32.mxu0 0.0
  %171 = vmatmul.mubr.f32.gmra.mrb[0].mxu0 %v81
  %v172 = vpop.f32.mrb[0].mxu0
  %v173 = vadd.f32 %v68, %v172
  %v174 = vpop.f32.mrb[0].mxu0
  %v175 = vadd.f32 %v68, %v174
  %176 = vdwg.mxu0
  %v177 = vmax.f32 %v155, 0.0
  %v178 = vmax.f32 %v157, 0.0
  %v179 = vmax.f32 %v161, 0.0
  %v180 = vmax.f32 %v163, 0.0
  %v181 = vmax.f32 %v167, 0.0
  %v182 = vmax.f32 %v169, 0.0
  %v183 = vmax.f32 %v173, 0.0
  %v184 = vmax.f32 %v175, 0.0
  %193 = vrot.lane.b32.xlu0 %v177, 126
  %v194 = vpop.permute.xlu0 %193
  %195 = vrot.lane.b32.xlu0 %v178, 126
  %v196 = vpop.permute.xlu0 %195
  %197 = vrot.lane.b32.xlu0 %v179, 126
  %v198 = vpop.permute.xlu0 %197
  %199 = vrot.lane.b32.xlu0 %v180, 126
  %v200 = vpop.permute.xlu0 %199
  %201 = vrot.lane.b32.xlu0 %v181, 126
  %v202 = vpop.permute.xlu0 %201
  %203 = vrot.lane.b32.xlu0 %v182, 126
  %v204 = vpop.permute.xlu0 %203
  %205 = vrot.lane.b32.xlu0 %v183, 126
  %v206 = vpop.permute.xlu0 %205
  %207 = vrot.lane.b32.xlu0 %v184, 126
  %v208 = vpop.permute.xlu0 %207
  %v209 = vsel %vm29, %v194, %v196
  %v210 = vsel %vm29, %v198, %v200
  %v211 = vsel %vm29, %v202, %v204
  %v212 = vsel %vm29, %v206, %v208
  %v221 = vsel %vm29, %v196, 0.0
  %v222 = vsel %vm29, %v200, 0.0
  %v223 = vsel %vm29, %v204, 0.0
  %v224 = vsel %vm29, %v208, 0.0
  %225 = vrot.lane.b32.xlu0 %v177, 124
  %v226 = vpop.permute.xlu0 %225
  %227 = vrot.lane.b32.xlu0 %v178, 124
  %v228 = vpop.permute.xlu0 %227
  %229 = vrot.lane.b32.xlu0 %v179, 124
  %v230 = vpop.permute.xlu0 %229
  %231 = vrot.lane.b32.xlu0 %v180, 124
  %v232 = vpop.permute.xlu0 %231
  %233 = vrot.lane.b32.xlu0 %v181, 124
  %v234 = vpop.permute.xlu0 %233
  %235 = vrot.lane.b32.xlu0 %v182, 124
  %v236 = vpop.permute.xlu0 %235
  %237 = vrot.lane.b32.xlu0 %v183, 124
  %v238 = vpop.permute.xlu0 %237
  %239 = vrot.lane.b32.xlu0 %v184, 124
  %v240 = vpop.permute.xlu0 %239
  %vm241 = vcmask 1014784
  %v242 = vsel %vm241, %v226, %v228
  %v243 = vsel %vm241, %v230, %v232
  %v244 = vsel %vm241, %v234, %v236
  %v245 = vsel %vm241, %v238, %v240
  %v254 = vsel %vm241, %v228, 0.0
  %v255 = vsel %vm241, %v232, 0.0
  %v256 = vsel %vm241, %v236, 0.0
  %v257 = vsel %vm241, %v240, 0.0
  %s258 = scalar_lea.vmem %s1, 32
  %v259 = vld [vmem:[%s258] sm:$0xff]
  %v260 = vld [vmem:[%s258 + $0x8] sm:$0xff]
  %v261 = vld [vmem:[%s258 + $0x10] sm:$0xff]
  %v262 = vld [vmem:[%s258 + $0x18] sm:$0xff]
  %s263 = scalar_lea.vmem %s2, 32
  %v264 = vld [vmem:[%s263] sm:$0xff]
  %v265 = vld [vmem:[%s263 + $0x8] sm:$0xff]
  %v266 = vld [vmem:[%s263 + $0x10] sm:$0xff]
  %v267 = vld [vmem:[%s263 + $0x18] sm:$0xff]
  %269 = vset.pattern.permute.xlu0 0
  %270 = vperm.xlu0 %269, %v264
  %v271 = vpop.permute.xlu0 %270
  %274 = vset.pattern.permute.xlu0 0
  %275 = vperm.xlu0 %274, %v265
  %v276 = vpop.permute.xlu0 %275
  %279 = vset.pattern.permute.xlu0 0
  %280 = vperm.xlu0 %279, %v266
  %v281 = vpop.permute.xlu0 %280
  %284 = vset.pattern.permute.xlu0 0
  %285 = vperm.xlu0 %284, %v267
  %v286 = vpop.permute.xlu0 %285
  %vm288 = vcmask 785408
  %v290 = vsel %vm288, %v259, 0
  %v293 = vsel %vm288, %v260, 0
  %v296 = vsel %vm288, %v261, 0
  %v299 = vsel %vm288, %v262, 0
  %301 = vmatprep.subr.mxu0 %v178
  %302 = vmatpush1.msra.mxu0 %v177
  %303 = vmatprep.subr.mxu0 %v180
  %304 = vmatpush1.msra.mxu0 %v179
  %305 = vmatprep.subr.mxu0 %v182
  %306 = vmatpush1.msra.mxu0 %v181
  %307 = vmatprep.subr.mxu0 %v184
  %308 = vmatpush1.msra.mxu0 %v183
  %309 = vmatprep.subr.mxu0 %v221
  %310 = vmatpush1.msra.mxu0 %v209
  %311 = vmatprep.subr.mxu0 %v222
  %312 = vmatpush1.msra.mxu0 %v210
  %313 = vmatprep.subr.mxu0 %v223
  %314 = vmatpush1.msra.mxu0 %v211
  %315 = vmatprep.subr.mxu0 %v224
  %316 = vmatpush1.msra.mxu0 %v212
  %317 = vmatprep.subr.mxu0 %v254
  %318 = vmatpush1.msra.mxu0 %v242
  %319 = vmatprep.subr.mxu0 %v255
  %320 = vmatpush1.msra.mxu0 %v243
  %321 = vmatprep.subr.mxu0 %v256
  %322 = vmatpush1.msra.mxu0 %v244
  %323 = vmatprep.subr.mxu0 %v257
  %324 = vmatpush1.msra.mxu0 %v245
  %325 = vmatprep.subr.mxu0 0.0
  %326 = vmatpush1.msra.mxu0 0.0
  %327 = vmatprep.subr.mxu0 0.0
  %328 = vmatpush1.msra.mxu0 0.0
  %329 = vmatprep.subr.mxu0 0.0
  %330 = vmatpush1.msra.mxu0 0.0
  %331 = vmatprep.subr.mxu0 0.0
  %332 = vmatpush1.msra.mxu0 0.0
  %333 = vmatprep.subr.mxu0 0.0
  %334 = vmatpush1.msra.mxu0 0.0
  %335 = vmatprep.subr.mxu0 0.0
  %336 = vmatpush1.msra.mxu0 0.0
  %337 = vmatprep.subr.mxu0 0.0
  %338 = vmatpush1.msra.mxu0 0.0
  %339 = vmatprep.subr.mxu0 0.0
  %340 = vmatpush1.msra.mxu0 0.0
  %341 = vmatprep.subr.mxu0 0.0
  %342 = vmatpush1.msra.mxu0 0.0
  %343 = vmatprep.subr.mxu0 0.0
  %344 = vmatpush1.msra.mxu0 0.0
  %345 = vmatprep.subr.mxu0 0.0
  %346 = vmatpush1.msra.mxu0 0.0
  %347 = vmatprep.subr.mxu0 0.0
  %348 = vmatpush1.msra.mxu0 0.0
  %349 = vmatprep.subr.mxu0 0.0
  %350 = vmatpush1.msra.mxu0 0.0
  %351 = vmatprep.subr.mxu0 0.0
  %352 = vmatpush1.msra.mxu0 0.0
  %353 = vmatprep.subr.mxu0 0.0
  %354 = vmatpush1.msra.mxu0 0.0
  %355 = vmatprep.subr.mxu0 0.0
  %356 = vmatpush1.msra.mxu0 0.0
  %357 = vmatprep.subr.mxu0 0.0
  %358 = vmatpush1.msra.mxu0 0.0
  %359 = vmatprep.subr.mxu0 0.0
  %360 = vmatpush1.msra.mxu0 0.0
  %361 = vmatprep.subr.mxu0 0.0
  %362 = vmatpush1.msra.mxu0 0.0
  %363 = vmatprep.subr.mxu0 0.0
  %364 = vmatpush1.msra.mxu0 0.0
  %365 = vmatprep.mubr.f32.mxu0 0.0
  %366 = vmatmul.mubr.f32.gmra.mrb[0].mxu0 %v290
  %v367 = vpop.f32.mrb[0].mxu0
  %v368 = vadd.f32 %v271, %v367
  %v369 = vpop.f32.mrb[0].mxu0
  %v370 = vadd.f32 %v271, %v369
  %371 = vmatprep.mubr.f32.mxu0 0.0
  %372 = vmatmul.mubr.f32.gmra.mrb[0].mxu0 %v293
  %v373 = vpop.f32.mrb[0].mxu0
  %v374 = vadd.f32 %v276, %v373
  %v375 = vpop.f32.mrb[0].mxu0
  %v376 = vadd.f32 %v276, %v375
  %377 = vmatprep.mubr.f32.mxu0 0.0
  %378 = vmatmul.mubr.f32.gmra.mrb[0].mxu0 %v296
  %v379 = vpop.f32.mrb[0].mxu0
  %v380 = vadd.f32 %v281, %v379
  %v381 = vpop.f32.mrb[0].mxu0
  %v382 = vadd.f32 %v281, %v381
  %383 = vmatprep.mubr.f32.mxu0 0.0
  %384 = vmatmul.mubr.f32.gmra.mrb[0].mxu0 %v299
  %v385 = vpop.f32.mrb[0].mxu0
  %v386 = vadd.f32 %v286, %v385
  %v387 = vpop.f32.mrb[0].mxu0
  %v388 = vadd.f32 %v286, %v387
  %389 = vdwg.mxu0
  %v390 = vmax.f32 %v368, 0.0
  %v391 = vmax.f32 %v370, 0.0
  %v392 = vmax.f32 %v374, 0.0
  %v393 = vmax.f32 %v376, 0.0
  %v394 = vmax.f32 %v380, 0.0
  %v395 = vmax.f32 %v382, 0.0
  %v396 = vmax.f32 %v386, 0.0
  %v397 = vmax.f32 %v388, 0.0
  %v398 = vmul.f32 %v390, %v390
  %v399 = vmul.f32 %v391, %v391
  %v400 = vmul.f32 %v392, %v392
  %v401 = vmul.f32 %v393, %v393
  %v402 = vmul.f32 %v394, %v394
  %v403 = vmul.f32 %v395, %v395
  %v404 = vmul.f32 %v396, %v396
  %v405 = vmul.f32 %v397, %v397
  %vm414 = vcmask 1041408
  %v415 = vrot.slane %v398, 6
  %v416 = vrot.slane %v399, 6
  %v417 = vrot.slane %v400, 6
  %v418 = vsel %vm414, %v415, %v417
  %v419 = vrot.slane %v401, 6
  %v420 = vsel %vm414, %v416, %v419
  %v421 = vrot.slane %v402, 6
  %v422 = vsel %vm414, %v417, %v421
  %v423 = vrot.slane %v403, 6
  %v424 = vsel %vm414, %v419, %v423
  %v425 = vrot.slane %v404, 6
  %v426 = vsel %vm414, %v421, %v425
  %v427 = vrot.slane %v405, 6
  %v428 = vsel %vm414, %v423, %v427
  %v439 = vsel %vm414, 0.0, %v415
  %v440 = vsel %vm414, 0.0, %v416
  %v441 = vsel %vm414, %v425, 0.0
  %v442 = vsel %vm414, %v427, 0.0
  %vm447 = vcmask 1046528
  %v448 = vrot.slane %v439, 1
  %v449 = vrot.slane %v418, 1
  %v450 = vsel %vm447, %v448, %v449
  %v451 = vrot.slane %v440, 1
  %v452 = vrot.slane %v420, 1
  %v453 = vsel %vm447, %v451, %v452
  %v454 = vrot.slane %v422, 1
  %v455 = vsel %vm447, %v449, %v454
  %v456 = vrot.slane %v424, 1
  %v457 = vsel %vm447, %v452, %v456
  %v458 = vrot.slane %v426, 1
  %v459 = vsel %vm447, %v454, %v458
  %v460 = vrot.slane %v428, 1
  %v461 = vsel %vm447, %v456, %v460
  %v462 = vrot.slane %v441, 1
  %v463 = vsel %vm447, %v458, %v462
  %v464 = vrot.slane %v442, 1
  %v465 = vsel %vm447, %v460, %v464
  %v474 = vadd.f32 %v439, %v450
  %v475 = vadd.f32 %v440, %v453
  %v476 = vadd.f32 %v418, %v455
  %v477 = vadd.f32 %v420, %v457
  %v478 = vadd.f32 %v422, %v459
  %v479 = vadd.f32 %v424, %v461
  %v480 = vadd.f32 %v426, %v463
  %v481 = vadd.f32 %v428, %v465
  %vm482 = vcmask 1045504
  %v483 = vrot.slane %v439, 2
  %v484 = vrot.slane %v418, 2
  %v485 = vsel %vm482, %v483, %v484
  %v486 = vrot.slane %v440, 2
  %v487 = vrot.slane %v420, 2
  %v488 = vsel %vm482, %v486, %v487
  %v489 = vrot.slane %v422, 2
  %v490 = vsel %vm482, %v484, %v489
  %v491 = vrot.slane %v424, 2
  %v492 = vsel %vm482, %v487, %v491
  %v493 = vrot.slane %v426, 2
  %v494 = vsel %vm482, %v489, %v493
  %v495 = vrot.slane %v428, 2
  %v496 = vsel %vm482, %v491, %v495
  %v497 = vrot.slane %v441, 2
  %v498 = vsel %vm482, %v493, %v497
  %v499 = vrot.slane %v442, 2
  %v500 = vsel %vm482, %v495, %v499
  %v509 = vadd.f32 %v474, %v485
  %v510 = vadd.f32 %v475, %v488
  %v511 = vadd.f32 %v476, %v490
  %v512 = vadd.f32 %v477, %v492
  %v513 = vadd.f32 %v478, %v494
  %v514 = vadd.f32 %v479, %v496
  %v515 = vadd.f32 %v480, %v498
  %v516 = vadd.f32 %v481, %v500
  %vm517 = vcmask 1044480
  %v518 = vrot.slane %v439, 3
  %v519 = vrot.slane %v418, 3
  %v520 = vsel %vm517, %v518, %v519
  %v521 = vrot.slane %v440, 3
  %v522 = vrot.slane %v420, 3
  %v523 = vsel %vm517, %v521, %v522
  %v524 = vrot.slane %v422, 3
  %v525 = vsel %vm517, %v519, %v524
  %v526 = vrot.slane %v424, 3
  %v527 = vsel %vm517, %v522, %v526
  %v528 = vrot.slane %v426, 3
  %v529 = vsel %vm517, %v524, %v528
  %v530 = vrot.slane %v428, 3
  %v531 = vsel %vm517, %v526, %v530
  %v532 = vrot.slane %v441, 3
  %v533 = vsel %vm517, %v528, %v532
  %v534 = vrot.slane %v442, 3
  %v535 = vsel %vm517, %v530, %v534
  %v544 = vadd.f32 %v509, %v520
  %v545 = vadd.f32 %v510, %v523
  %v546 = vadd.f32 %v511, %v525
  %v547 = vadd.f32 %v512, %v527
  %v548 = vadd.f32 %v513, %v529
  %v549 = vadd.f32 %v514, %v531
  %v550 = vadd.f32 %v515, %v533
  %v551 = vadd.f32 %v516, %v535
  %v552 = vrot.slane %v439, 4
  %v553 = vrot.slane %v418, 4
  %v554 = vsel %vm39, %v552, %v553
  %v555 = vrot.slane %v440, 4
  %v556 = vrot.slane %v420, 4
  %v557 = vsel %vm39, %v555, %v556
  %v558 = vrot.slane %v422, 4
  %v559 = vsel %vm39, %v553, %v558
  %v560 = vrot.slane %v424, 4
  %v561 = vsel %vm39, %v556, %v560
  %v562 = vrot.slane %v426, 4
  %v563 = vsel %vm39, %v558, %v562
  %v564 = vrot.slane %v428, 4
  %v565 = vsel %vm39, %v560, %v564
  %v566 = vrot.slane %v441, 4
  %v567 = vsel %vm39, %v562, %v566
  %v568 = vrot.slane %v442, 4
  %v569 = vsel %vm39, %v564, %v568
  %v578 = vadd.f32 %v544, %v554
  %v579 = vadd.f32 %v545, %v557
  %v580 = vadd.f32 %v546, %v559
  %v581 = vadd.f32 %v547, %v561
  %v582 = vadd.f32 %v548, %v563
  %v583 = vadd.f32 %v549, %v565
  %v584 = vadd.f32 %v550, %v567
  %v585 = vadd.f32 %v551, %v569
  %v586 = vmul.f32 %v578, 4e-05
  %v587 = vmul.f32 %v579, 4e-05
  %v588 = vmul.f32 %v580, 4e-05
  %v589 = vmul.f32 %v581, 4e-05
  %v590 = vmul.f32 %v582, 4e-05
  %v591 = vmul.f32 %v583, 4e-05
  %v592 = vmul.f32 %v584, 4e-05
  %v593 = vmul.f32 %v585, 4e-05
  %v594 = vadd.f32 %v586, 1.0
  %v595 = vadd.f32 %v587, 1.0
  %v596 = vadd.f32 %v588, 1.0
  %v597 = vadd.f32 %v589, 1.0
  %v598 = vadd.f32 %v590, 1.0
  %v599 = vadd.f32 %v591, 1.0
  %v600 = vadd.f32 %v592, 1.0
  %v601 = vadd.f32 %v593, 1.0
  %v602 = vrsqrt.pop %v594
  %v603 = vmul.f32 %v594, %v602
  %vm604 = vcmp.eq.f32.partialorder %v594, inf
  %v605 = vsel %vm604, %v594, %v603
  %vm606 = vcmp.eq.f32.partialorder %v594, 0.0
  %v607 = vand.u32 %v594, 2147483648
  %v608 = vsel %vm606, %v607, %v605
  %v609 = vrsqrt.pop %v595
  %v610 = vmul.f32 %v595, %v609
  %vm611 = vcmp.eq.f32.partialorder %v595, inf
  %v612 = vsel %vm611, %v595, %v610
  %vm613 = vcmp.eq.f32.partialorder %v595, 0.0
  %v614 = vand.u32 %v595, 2147483648
  %v615 = vsel %vm613, %v614, %v612
  %v616 = vrsqrt.pop %v596
  %v617 = vmul.f32 %v596, %v616
  %vm618 = vcmp.eq.f32.partialorder %v596, inf
  %v619 = vsel %vm618, %v596, %v617
  %vm620 = vcmp.eq.f32.partialorder %v596, 0.0
  %v621 = vand.u32 %v596, 2147483648
  %v622 = vsel %vm620, %v621, %v619
  %v623 = vrsqrt.pop %v597
  %v624 = vmul.f32 %v597, %v623
  %vm625 = vcmp.eq.f32.partialorder %v597, inf
  %v626 = vsel %vm625, %v597, %v624
  %vm627 = vcmp.eq.f32.partialorder %v597, 0.0
  %v628 = vand.u32 %v597, 2147483648
  %v629 = vsel %vm627, %v628, %v626
  %v630 = vrsqrt.pop %v598
  %v631 = vmul.f32 %v598, %v630
  %vm632 = vcmp.eq.f32.partialorder %v598, inf
  %v633 = vsel %vm632, %v598, %v631
  %vm634 = vcmp.eq.f32.partialorder %v598, 0.0
  %v635 = vand.u32 %v598, 2147483648
  %v636 = vsel %vm634, %v635, %v633
  %v637 = vrsqrt.pop %v599
  %v638 = vmul.f32 %v599, %v637
  %vm639 = vcmp.eq.f32.partialorder %v599, inf
  %v640 = vsel %vm639, %v599, %v638
  %vm641 = vcmp.eq.f32.partialorder %v599, 0.0
  %v642 = vand.u32 %v599, 2147483648
  %v643 = vsel %vm641, %v642, %v640
  %v644 = vrsqrt.pop %v600
  %v645 = vmul.f32 %v600, %v644
  %vm646 = vcmp.eq.f32.partialorder %v600, inf
  %v647 = vsel %vm646, %v600, %v645
  %vm648 = vcmp.eq.f32.partialorder %v600, 0.0
  %v649 = vand.u32 %v600, 2147483648
  %v650 = vsel %vm648, %v649, %v647
  %v651 = vrsqrt.pop %v601
  %v652 = vmul.f32 %v601, %v651
  %vm653 = vcmp.eq.f32.partialorder %v601, inf
  %v654 = vsel %vm653, %v601, %v652
  %vm655 = vcmp.eq.f32.partialorder %v601, 0.0
  %v656 = vand.u32 %v601, 2147483648
  %v657 = vsel %vm655, %v656, %v654
  %v658 = vmul.f32 %v594, %v608
  %v659 = vmul.f32 %v595, %v615
  %v660 = vmul.f32 %v596, %v622
  %v661 = vmul.f32 %v597, %v629
  %v662 = vmul.f32 %v598, %v636
  %v663 = vmul.f32 %v599, %v643
  %v664 = vmul.f32 %v600, %v650
  %v665 = vmul.f32 %v601, %v657
  %v666 = vrsqrt.pop %v658
  %v667 = vrsqrt.pop %v659
  %v668 = vrsqrt.pop %v660
  %v669 = vrsqrt.pop %v661
  %v670 = vrsqrt.pop %v662
  %v671 = vrsqrt.pop %v663
  %v672 = vrsqrt.pop %v664
  %v673 = vrsqrt.pop %v665
  %v674 = vmul.f32 %v390, %v666
  %v675 = vmul.f32 %v391, %v667
  %v676 = vmul.f32 %v392, %v668
  %v677 = vmul.f32 %v393, %v669
  %v678 = vmul.f32 %v394, %v670
  %v679 = vmul.f32 %v395, %v671
  %v680 = vmul.f32 %v396, %v672
  %v681 = vmul.f32 %v397, %v673
  %690 = vrot.lane.b32.xlu0 %v674, 124
  %v691 = vpop.permute.xlu0 %690
  %692 = vrot.lane.b32.xlu0 %v675, 124
  %v693 = vpop.permute.xlu0 %692
  %694 = vrot.lane.b32.xlu0 %v676, 124
  %v695 = vpop.permute.xlu0 %694
  %696 = vrot.lane.b32.xlu0 %v677, 124
  %v697 = vpop.permute.xlu0 %696
  %698 = vrot.lane.b32.xlu0 %v678, 124
  %v699 = vpop.permute.xlu0 %698
  %700 = vrot.lane.b32.xlu0 %v679, 124
  %v701 = vpop.permute.xlu0 %700
  %702 = vrot.lane.b32.xlu0 %v680, 124
  %v703 = vpop.permute.xlu0 %702
  %704 = vrot.lane.b32.xlu0 %v681, 124
  %v705 = vpop.permute.xlu0 %704
  %v706 = vsel %vm241, %v691, %v693
  %v707 = vsel %vm241, %v695, %v697
  %v708 = vsel %vm241, %v699, %v701
  %v709 = vsel %vm241, %v703, %v705
  %v718 = vsel %vm241, %v693, 0.0
  %v719 = vsel %vm241, %v697, 0.0
  %v720 = vsel %vm241, %v701, 0.0
  %v721 = vsel %vm241, %v705, 0.0
  %722 = vrot.lane.b32.xlu0 %v674, 120
  %v723 = vpop.permute.xlu0 %722
  %724 = vrot.lane.b32.xlu0 %v675, 120
  %v725 = vpop.permute.xlu0 %724
  %726 = vrot.lane.b32.xlu0 %v676, 120
  %v727 = vpop.permute.xlu0 %726
  %728 = vrot.lane.b32.xlu0 %v677, 120
  %v729 = vpop.permute.xlu0 %728
  %730 = vrot.lane.b32.xlu0 %v678, 120
  %v731 = vpop.permute.xlu0 %730
  %732 = vrot.lane.b32.xlu0 %v679, 120
  %v733 = vpop.permute.xlu0 %732
  %734 = vrot.lane.b32.xlu0 %v680, 120
  %v735 = vpop.permute.xlu0 %734
  %736 = vrot.lane.b32.xlu0 %v681, 120
  %v737 = vpop.permute.xlu0 %736
  %vm738 = vcmask 982016
  %v739 = vsel %vm738, %v723, %v725
  %v740 = vsel %vm738, %v727, %v729
  %v741 = vsel %vm738, %v731, %v733
  %v742 = vsel %vm738, %v735, %v737
  %v751 = vsel %vm738, %v725, 0.0
  %v752 = vsel %vm738, %v729, 0.0
  %v753 = vsel %vm738, %v733, 0.0
  %v754 = vsel %vm738, %v737, 0.0
  %s755 = scalar_lea.vmem %s1, 64
  %v756 = vld [vmem:[%s755] sm:$0xff]
  %v757 = vld [vmem:[%s755 + $0x8] sm:$0xff]
  %v758 = vld [vmem:[%s755 + $0x10] sm:$0xff]
  %v759 = vld [vmem:[%s755 + $0x18] sm:$0xff]
  %s760 = scalar_lea.vmem %s2, 64
  %v761 = vld [vmem:[%s760] sm:$0xff]
  %v762 = vld [vmem:[%s760 + $0x8] sm:$0xff]
  %v763 = vld [vmem:[%s760 + $0x10] sm:$0xff]
  %v764 = vld [vmem:[%s760 + $0x18] sm:$0xff]
  %766 = vset.pattern.permute.xlu0 0
  %767 = vperm.xlu0 %766, %v761
  %v768 = vpop.permute.xlu0 %767
  %771 = vset.pattern.permute.xlu0 0
  %772 = vperm.xlu0 %771, %v762
  %v773 = vpop.permute.xlu0 %772
  %776 = vset.pattern.permute.xlu0 0
  %777 = vperm.xlu0 %776, %v763
  %v778 = vpop.permute.xlu0 %777
  %781 = vset.pattern.permute.xlu0 0
  %782 = vperm.xlu0 %781, %v764
  %v783 = vpop.permute.xlu0 %782
  %v786 = vsel %vm288, %v756, 0
  %v789 = vsel %vm288, %v757, 0
  %v792 = vsel %vm288, %v758, 0
  %v795 = vsel %vm288, %v759, 0
  %797 = vmatprep.subr.mxu0 %v675
  %798 = vmatpush1.msra.mxu0 %v674
  %799 = vmatprep.subr.mxu0 %v677
  %800 = vmatpush1.msra.mxu0 %v676
  %801 = vmatprep.subr.mxu0 %v679
  %802 = vmatpush1.msra.mxu0 %v678
  %803 = vmatprep.subr.mxu0 %v681
  %804 = vmatpush1.msra.mxu0 %v680
  %805 = vmatprep.subr.mxu0 %v718
  %806 = vmatpush1.msra.mxu0 %v706
  %807 = vmatprep.subr.mxu0 %v719
  %808 = vmatpush1.msra.mxu0 %v707
  %809 = vmatprep.subr.mxu0 %v720
  %810 = vmatpush1.msra.mxu0 %v708
  %811 = vmatprep.subr.mxu0 %v721
  %812 = vmatpush1.msra.mxu0 %v709
  %813 = vmatprep.subr.mxu0 %v751
  %814 = vmatpush1.msra.mxu0 %v739
  %815 = vmatprep.subr.mxu0 %v752
  %816 = vmatpush1.msra.mxu0 %v740
  %817 = vmatprep.subr.mxu0 %v753
  %818 = vmatpush1.msra.mxu0 %v741
  %819 = vmatprep.subr.mxu0 %v754
  %820 = vmatpush1.msra.mxu0 %v742
  %821 = vmatprep.subr.mxu0 0.0
  %822 = vmatpush1.msra.mxu0 0.0
  %823 = vmatprep.subr.mxu0 0.0
  %824 = vmatpush1.msra.mxu0 0.0
  %825 = vmatprep.subr.mxu0 0.0
  %826 = vmatpush1.msra.mxu0 0.0
  %827 = vmatprep.subr.mxu0 0.0
  %828 = vmatpush1.msra.mxu0 0.0
  %829 = vmatprep.subr.mxu0 0.0
  %830 = vmatpush1.msra.mxu0 0.0
  %831 = vmatprep.subr.mxu0 0.0
  %832 = vmatpush1.msra.mxu0 0.0
  %833 = vmatprep.subr.mxu0 0.0
  %834 = vmatpush1.msra.mxu0 0.0
  %835 = vmatprep.subr.mxu0 0.0
  %836 = vmatpush1.msra.mxu0 0.0
  %837 = vmatprep.subr.mxu0 0.0
  %838 = vmatpush1.msra.mxu0 0.0
  %839 = vmatprep.subr.mxu0 0.0
  %840 = vmatpush1.msra.mxu0 0.0
  %841 = vmatprep.subr.mxu0 0.0
  %842 = vmatpush1.msra.mxu0 0.0
  %843 = vmatprep.subr.mxu0 0.0
  %844 = vmatpush1.msra.mxu0 0.0
  %845 = vmatprep.subr.mxu0 0.0
  %846 = vmatpush1.msra.mxu0 0.0
  %847 = vmatprep.subr.mxu0 0.0
  %848 = vmatpush1.msra.mxu0 0.0
  %849 = vmatprep.subr.mxu0 0.0
  %850 = vmatpush1.msra.mxu0 0.0
  %851 = vmatprep.subr.mxu0 0.0
  %852 = vmatpush1.msra.mxu0 0.0
  %853 = vmatprep.subr.mxu0 0.0
  %854 = vmatpush1.msra.mxu0 0.0
  %855 = vmatprep.subr.mxu0 0.0
  %856 = vmatpush1.msra.mxu0 0.0
  %857 = vmatprep.subr.mxu0 0.0
  %858 = vmatpush1.msra.mxu0 0.0
  %859 = vmatprep.subr.mxu0 0.0
  %860 = vmatpush1.msra.mxu0 0.0
  %861 = vmatprep.mubr.f32.mxu0 0.0
  %862 = vmatmul.mubr.f32.gmra.mrb[0].mxu0 %v786
  %v863 = vpop.f32.mrb[0].mxu0
  %v864 = vadd.f32 %v768, %v863
  %v865 = vpop.f32.mrb[0].mxu0
  %v866 = vadd.f32 %v768, %v865
  %867 = vmatprep.mubr.f32.mxu0 0.0
  %868 = vmatmul.mubr.f32.gmra.mrb[0].mxu0 %v789
  %v869 = vpop.f32.mrb[0].mxu0
  %v870 = vadd.f32 %v773, %v869
  %v871 = vpop.f32.mrb[0].mxu0
  %v872 = vadd.f32 %v773, %v871
  %873 = vmatprep.mubr.f32.mxu0 0.0
  %874 = vmatmul.mubr.f32.gmra.mrb[0].mxu0 %v792
  %v875 = vpop.f32.mrb[0].mxu0
  %v876 = vadd.f32 %v778, %v875
  %v877 = vpop.f32.mrb[0].mxu0
  %v878 = vadd.f32 %v778, %v877
  %879 = vmatprep.mubr.f32.mxu0 0.0
  %880 = vmatmul.mubr.f32.gmra.mrb[0].mxu0 %v795
  %v881 = vpop.f32.mrb[0].mxu0
  %v882 = vadd.f32 %v783, %v881
  %v883 = vpop.f32.mrb[0].mxu0
  %v884 = vadd.f32 %v783, %v883
  %885 = vdwg.mxu0
  %v886 = vmax.f32 %v864, 0.0
  %v887 = vmax.f32 %v866, 0.0
  %v888 = vmax.f32 %v870, 0.0
  %v889 = vmax.f32 %v872, 0.0
  %v890 = vmax.f32 %v876, 0.0
  %v891 = vmax.f32 %v878, 0.0
  %v892 = vmax.f32 %v882, 0.0
  %v893 = vmax.f32 %v884, 0.0
  %902 = vrot.lane.b32.xlu0 %v886, 124
  %v903 = vpop.permute.xlu0 %902
  %904 = vrot.lane.b32.xlu0 %v887, 124
  %v905 = vpop.permute.xlu0 %904
  %906 = vrot.lane.b32.xlu0 %v888, 124
  %v907 = vpop.permute.xlu0 %906
  %908 = vrot.lane.b32.xlu0 %v889, 124
  %v909 = vpop.permute.xlu0 %908
  %910 = vrot.lane.b32.xlu0 %v890, 124
  %v911 = vpop.permute.xlu0 %910
  %912 = vrot.lane.b32.xlu0 %v891, 124
  %v913 = vpop.permute.xlu0 %912
  %914 = vrot.lane.b32.xlu0 %v892, 124
  %v915 = vpop.permute.xlu0 %914
  %916 = vrot.lane.b32.xlu0 %v893, 124
  %v917 = vpop.permute.xlu0 %916
  %v918 = vsel %vm241, %v903, %v905
  %v919 = vsel %vm241, %v907, %v909
  %v920 = vsel %vm241, %v911, %v913
  %v921 = vsel %vm241, %v915, %v917
  %v930 = vsel %vm241, %v905, 0.0
  %v931 = vsel %vm241, %v909, 0.0
  %v932 = vsel %vm241, %v913, 0.0
  %v933 = vsel %vm241, %v917, 0.0
  %v934 = vmax.f32 %v886, %v918
  %v935 = vmax.f32 %v887, %v930
  %v936 = vmax.f32 %v888, %v919
  %v937 = vmax.f32 %v889, %v931
  %v938 = vmax.f32 %v890, %v920
  %v939 = vmax.f32 %v891, %v932
  %v940 = vmax.f32 %v892, %v921
  %v941 = vmax.f32 %v893, %v933
  %942 = vrot.lane.b32.xlu0 %v886, 120
  %v943 = vpop.permute.xlu0 %942
  %944 = vrot.lane.b32.xlu0 %v887, 120
  %v945 = vpop.permute.xlu0 %944
  %946 = vrot.lane.b32.xlu0 %v888, 120
  %v947 = vpop.permute.xlu0 %946
  %948 = vrot.lane.b32.xlu0 %v889, 120
  %v949 = vpop.permute.xlu0 %948
  %950 = vrot.lane.b32.xlu0 %v890, 120
  %v951 = vpop.permute.xlu0 %950
  %952 = vrot.lane.b32.xlu0 %v891, 120
  %v953 = vpop.permute.xlu0 %952
  %954 = vrot.lane.b32.xlu0 %v892, 120
  %v955 = vpop.permute.xlu0 %954
  %956 = vrot.lane.b32.xlu0 %v893, 120
  %v957 = vpop.permute.xlu0 %956
  %v958 = vsel %vm738, %v943, %v945
  %v959 = vsel %vm738, %v947, %v949
  %v960 = vsel %vm738, %v951, %v953
  %v961 = vsel %vm738, %v955, %v957
  %v970 = vsel %vm738, %v945, 0.0
  %v971 = vsel %vm738, %v949, 0.0
  %v972 = vsel %vm738, %v953, 0.0
  %v973 = vsel %vm738, %v957, 0.0
  %v974 = vmax.f32 %v934, %v958
  %v975 = vmax.f32 %v935, %v970
  %v976 = vmax.f32 %v936, %v959
  %v977 = vmax.f32 %v937, %v971
  %v978 = vmax.f32 %v938, %v960
  %v979 = vmax.f32 %v939, %v972
  %v980 = vmax.f32 %v940, %v961
  %v981 = vmax.f32 %v941, %v973
  %990 = vrot.lane.b32.xlu0 %v974, 120
  %v991 = vpop.permute.xlu0 %990
  %992 = vrot.lane.b32.xlu0 %v975, 120
  %v993 = vpop.permute.xlu0 %992
  %994 = vrot.lane.b32.xlu0 %v976, 120
  %v995 = vpop.permute.xlu0 %994
  %996 = vrot.lane.b32.xlu0 %v977, 120
  %v997 = vpop.permute.xlu0 %996
  %998 = vrot.lane.b32.xlu0 %v978, 120
  %v999 = vpop.permute.xlu0 %998
  %1000 = vrot.lane.b32.xlu0 %v979, 120
  %v1001 = vpop.permute.xlu0 %1000
  %1002 = vrot.lane.b32.xlu0 %v980, 120
  %v1003 = vpop.permute.xlu0 %1002
  %1004 = vrot.lane.b32.xlu0 %v981, 120
  %v1005 = vpop.permute.xlu0 %1004
  %v1006 = vsel %vm738, %v991, %v993
  %v1007 = vsel %vm738, %v995, %v997
  %v1008 = vsel %vm738, %v999, %v1001
  %v1009 = vsel %vm738, %v1003, %v1005
  %v1018 = vsel %vm738, %v993, 0.0
  %v1019 = vsel %vm738, %v997, 0.0
  %v1020 = vsel %vm738, %v1001, 0.0
  %v1021 = vsel %vm738, %v1005, 0.0
  %1022 = vrot.lane.b32.xlu0 %v974, 112
  %v1023 = vpop.permute.xlu0 %1022
  %1024 = vrot.lane.b32.xlu0 %v975, 112
  %v1025 = vpop.permute.xlu0 %1024
  %1026 = vrot.lane.b32.xlu0 %v976, 112
  %v1027 = vpop.permute.xlu0 %1026
  %1028 = vrot.lane.b32.xlu0 %v977, 112
  %v1029 = vpop.permute.xlu0 %1028
  %1030 = vrot.lane.b32.xlu0 %v978, 112
  %v1031 = vpop.permute.xlu0 %1030
  %1032 = vrot.lane.b32.xlu0 %v979, 112
  %v1033 = vpop.permute.xlu0 %1032
  %1034 = vrot.lane.b32.xlu0 %v980, 112
  %v1035 = vpop.permute.xlu0 %1034
  %1036 = vrot.lane.b32.xlu0 %v981, 112
  %v1037 = vpop.permute.xlu0 %1036
  %vm1038 = vcmask 916480
  %v1039 = vsel %vm1038, %v1023, %v1025
  %v1040 = vsel %vm1038, %v1027, %v1029
  %v1041 = vsel %vm1038, %v1031, %v1033
  %v1042 = vsel %vm1038, %v1035, %v1037
  %v1051 = vsel %vm1038, %v1025, 0.0
  %v1052 = vsel %vm1038, %v1029, 0.0
  %v1053 = vsel %vm1038, %v1033, 0.0
  %v1054 = vsel %vm1038, %v1037, 0.0
  %s1055 = scalar_lea.vmem %s1, 96
  %v1056 = vld [vmem:[%s1055] sm:$0xff]
  %v1057 = vld [vmem:[%s1055 + $0x8] sm:$0xff]
  %v1058 = vld [vmem:[%s1055 + $0x10] sm:$0xff]
  %v1059 = vld [vmem:[%s1055 + $0x18] sm:$0xff]
  %s1060 = scalar_lea.vmem %s2, 96
  %v1061 = vld [vmem:[%s1060] sm:$0xff]
  %v1062 = vld [vmem:[%s1060 + $0x8] sm:$0xff]
  %v1063 = vld [vmem:[%s1060 + $0x10] sm:$0xff]
  %v1064 = vld [vmem:[%s1060 + $0x18] sm:$0xff]
  %1066 = vset.pattern.permute.xlu0 0
  %1067 = vperm.xlu0 %1066, %v1061
  %v1068 = vpop.permute.xlu0 %1067
  %1071 = vset.pattern.permute.xlu0 0
  %1072 = vperm.xlu0 %1071, %v1062
  %v1073 = vpop.permute.xlu0 %1072
  %1076 = vset.pattern.permute.xlu0 0
  %1077 = vperm.xlu0 %1076, %v1063
  %v1078 = vpop.permute.xlu0 %1077
  %1081 = vset.pattern.permute.xlu0 0
  %1082 = vperm.xlu0 %1081, %v1064
  %v1083 = vpop.permute.xlu0 %1082
  %v1086 = vsel %vm288, %v1056, 0
  %v1089 = vsel %vm288, %v1057, 0
  %v1092 = vsel %vm288, %v1058, 0
  %v1095 = vsel %vm288, %v1059, 0
  %1097 = vmatprep.subr.mxu0 %v975
  %1098 = vmatpush1.msra.mxu0 %v974
  %1099 = vmatprep.subr.mxu0 %v977
  %1100 = vmatpush1.msra.mxu0 %v976
  %1101 = vmatprep.subr.mxu0 %v979
  %1102 = vmatpush1.msra.mxu0 %v978
  %1103 = vmatprep.subr.mxu0 %v981
  %1104 = vmatpush1.msra.mxu0 %v980
  %1105 = vmatprep.subr.mxu0 %v1018
  %1106 = vmatpush1.msra.mxu0 %v1006
  %1107 = vmatprep.subr.mxu0 %v1019
  %1108 = vmatpush1.msra.mxu0 %v1007
  %1109 = vmatprep.subr.mxu0 %v1020
  %1110 = vmatpush1.msra.mxu0 %v1008
  %1111 = vmatprep.subr.mxu0 %v1021
  %1112 = vmatpush1.msra.mxu0 %v1009
  %1113 = vmatprep.subr.mxu0 %v1051
  %1114 = vmatpush1.msra.mxu0 %v1039
  %1115 = vmatprep.subr.mxu0 %v1052
  %1116 = vmatpush1.msra.mxu0 %v1040
  %1117 = vmatprep.subr.mxu0 %v1053
  %1118 = vmatpush1.msra.mxu0 %v1041
  %1119 = vmatprep.subr.mxu0 %v1054
  %1120 = vmatpush1.msra.mxu0 %v1042
  %1121 = vmatprep.subr.mxu0 0.0
  %1122 = vmatpush1.msra.mxu0 0.0
  %1123 = vmatprep.subr.mxu0 0.0
  %1124 = vmatpush1.msra.mxu0 0.0
  %1125 = vmatprep.subr.mxu0 0.0
  %1126 = vmatpush1.msra.mxu0 0.0
  %1127 = vmatprep.subr.mxu0 0.0
  %1128 = vmatpush1.msra.mxu0 0.0
  %1129 = vmatprep.subr.mxu0 0.0
  %1130 = vmatpush1.msra.mxu0 0.0
  %1131 = vmatprep.subr.mxu0 0.0
  %1132 = vmatpush1.msra.mxu0 0.0
  %1133 = vmatprep.subr.mxu0 0.0
  %1134 = vmatpush1.msra.mxu0 0.0
  %1135 = vmatprep.subr.mxu0 0.0
  %1136 = vmatpush1.msra.mxu0 0.0
  %1137 = vmatprep.subr.mxu0 0.0
  %1138 = vmatpush1.msra.mxu0 0.0
  %1139 = vmatprep.subr.mxu0 0.0
  %1140 = vmatpush1.msra.mxu0 0.0
  %1141 = vmatprep.subr.mxu0 0.0
  %1142 = vmatpush1.msra.mxu0 0.0
  %1143 = vmatprep.subr.mxu0 0.0
  %1144 = vmatpush1.msra.mxu0 0.0
  %1145 = vmatprep.subr.mxu0 0.0
  %1146 = vmatpush1.msra.mxu0 0.0
  %1147 = vmatprep.subr.mxu0 0.0
  %1148 = vmatpush1.msra.mxu0 0.0
  %1149 = vmatprep.subr.mxu0 0.0
  %1150 = vmatpush1.msra.mxu0 0.0
  %1151 = vmatprep.subr.mxu0 0.0
  %1152 = vmatpush1.msra.mxu0 0.0
  %1153 = vmatprep.subr.mxu0 0.0
  %1154 = vmatpush1.msra.mxu0 0.0
  %1155 = vmatprep.subr.mxu0 0.0
  %1156 = vmatpush1.msra.mxu0 0.0
  %1157 = vmatprep.subr.mxu0 0.0
  %1158 = vmatpush1.msra.mxu0 0.0
  %1159 = vmatprep.subr.mxu0 0.0
  %1160 = vmatpush1.msra.mxu0 0.0
  %1161 = vmatprep.mubr.f32.mxu0 0.0
  %1162 = vmatmul.mubr.f32.gmra.mrb[0].mxu0 %v1086
  %v1163 = vpop.f32.mrb[0].mxu0
  %v1164 = vadd.f32 %v1068, %v1163
  %v1165 = vpop.f32.mrb[0].mxu0
  %v1166 = vadd.f32 %v1068, %v1165
  %1167 = vmatprep.mubr.f32.mxu0 0.0
  %1168 = vmatmul.mubr.f32.gmra.mrb[0].mxu0 %v1089
  %v1169 = vpop.f32.mrb[0].mxu0
  %v1170 = vadd.f32 %v1073, %v1169
  %v1171 = vpop.f32.mrb[0].mxu0
  %v1172 = vadd.f32 %v1073, %v1171
  %1173 = vmatprep.mubr.f32.mxu0 0.0
  %1174 = vmatmul.mubr.f32.gmra.mrb[0].mxu0 %v1092
  %v1175 = vpop.f32.mrb[0].mxu0
  %v1176 = vadd.f32 %v1078, %v1175
  %v1177 = vpop.f32.mrb[0].mxu0
  %v1178 = vadd.f32 %v1078, %v1177
  %1179 = vmatprep.mubr.f32.mxu0 0.0
  %1180 = vmatmul.mubr.f32.gmra.mrb[0].mxu0 %v1095
  %v1181 = vpop.f32.mrb[0].mxu0
  %v1182 = vadd.f32 %v1083, %v1181
  %v1183 = vpop.f32.mrb[0].mxu0
  %v1184 = vadd.f32 %v1083, %v1183
  %1185 = vdwg.mxu0
  %v1186 = vmax.f32 %v1164, 0.0
  %v1187 = vmax.f32 %v1166, 0.0
  %v1188 = vmax.f32 %v1170, 0.0
  %v1189 = vmax.f32 %v1172, 0.0
  %v1190 = vmax.f32 %v1176, 0.0
  %v1191 = vmax.f32 %v1178, 0.0
  %v1192 = vmax.f32 %v1182, 0.0
  %v1193 = vmax.f32 %v1184, 0.0
  %v1194 = vmul.f32 %v1186, %v1186
  %v1195 = vmul.f32 %v1187, %v1187
  %v1196 = vmul.f32 %v1188, %v1188
  %v1197 = vmul.f32 %v1189, %v1189
  %v1198 = vmul.f32 %v1190, %v1190
  %v1199 = vmul.f32 %v1191, %v1191
  %v1200 = vmul.f32 %v1192, %v1192
  %v1201 = vmul.f32 %v1193, %v1193
  %v1210 = vrot.slane %v1194, 6
  %v1211 = vrot.slane %v1195, 6
  %v1212 = vrot.slane %v1196, 6
  %v1213 = vsel %vm414, %v1210, %v1212
  %v1214 = vrot.slane %v1197, 6
  %v1215 = vsel %vm414, %v1211, %v1214
  %v1216 = vrot.slane %v1198, 6
  %v1217 = vsel %vm414, %v1212, %v1216
  %v1218 = vrot.slane %v1199, 6
  %v1219 = vsel %vm414, %v1214, %v1218
  %v1220 = vrot.slane %v1200, 6
  %v1221 = vsel %vm414, %v1216, %v1220
  %v1222 = vrot.slane %v1201, 6
  %v1223 = vsel %vm414, %v1218, %v1222
  %v1234 = vsel %vm414, 0.0, %v1210
  %v1235 = vsel %vm414, 0.0, %v1211
  %v1236 = vsel %vm414, %v1220, 0.0
  %v1237 = vsel %vm414, %v1222, 0.0
  %v1242 = vrot.slane %v1234, 1
  %v1243 = vrot.slane %v1213, 1
  %v1244 = vsel %vm447, %v1242, %v1243
  %v1245 = vrot.slane %v1235, 1
  %v1246 = vrot.slane %v1215, 1
  %v1247 = vsel %vm447, %v1245, %v1246
  %v1248 = vrot.slane %v1217, 1
  %v1249 = vsel %vm447, %v1243, %v1248
  %v1250 = vrot.slane %v1219, 1
  %v1251 = vsel %vm447, %v1246, %v1250
  %v1252 = vrot.slane %v1221, 1
  %v1253 = vsel %vm447, %v1248, %v1252
  %v1254 = vrot.slane %v1223, 1
  %v1255 = vsel %vm447, %v1250, %v1254
  %v1256 = vrot.slane %v1236, 1
  %v1257 = vsel %vm447, %v1252, %v1256
  %v1258 = vrot.slane %v1237, 1
  %v1259 = vsel %vm447, %v1254, %v1258
  %v1268 = vadd.f32 %v1234, %v1244
  %v1269 = vadd.f32 %v1235, %v1247
  %v1270 = vadd.f32 %v1213, %v1249
  %v1271 = vadd.f32 %v1215, %v1251
  %v1272 = vadd.f32 %v1217, %v1253
  %v1273 = vadd.f32 %v1219, %v1255
  %v1274 = vadd.f32 %v1221, %v1257
  %v1275 = vadd.f32 %v1223, %v1259
  %v1276 = vrot.slane %v1234, 2
  %v1277 = vrot.slane %v1213, 2
  %v1278 = vsel %vm482, %v1276, %v1277
  %v1279 = vrot.slane %v1235, 2
  %v1280 = vrot.slane %v1215, 2
  %v1281 = vsel %vm482, %v1279, %v1280
  %v1282 = vrot.slane %v1217, 2
  %v1283 = vsel %vm482, %v1277, %v1282
  %v1284 = vrot.slane %v1219, 2
  %v1285 = vsel %vm482, %v1280, %v1284
  %v1286 = vrot.slane %v1221, 2
  %v1287 = vsel %vm482, %v1282, %v1286
  %v1288 = vrot.slane %v1223, 2
  %v1289 = vsel %vm482, %v1284, %v1288
  %v1290 = vrot.slane %v1236, 2
  %v1291 = vsel %vm482, %v1286, %v1290
  %v1292 = vrot.slane %v1237, 2
  %v1293 = vsel %vm482, %v1288, %v1292
  %v1302 = vadd.f32 %v1268, %v1278
  %v1303 = vadd.f32 %v1269, %v1281
  %v1304 = vadd.f32 %v1270, %v1283
  %v1305 = vadd.f32 %v1271, %v1285
  %v1306 = vadd.f32 %v1272, %v1287
  %v1307 = vadd.f32 %v1273, %v1289
  %v1308 = vadd.f32 %v1274, %v1291
  %v1309 = vadd.f32 %v1275, %v1293
  %v1310 = vrot.slane %v1234, 3
  %v1311 = vrot.slane %v1213, 3
  %v1312 = vsel %vm517, %v1310, %v1311
  %v1313 = vrot.slane %v1235, 3
  %v1314 = vrot.slane %v1215, 3
  %v1315 = vsel %vm517, %v1313, %v1314
  %v1316 = vrot.slane %v1217, 3
  %v1317 = vsel %vm517, %v1311, %v1316
  %v1318 = vrot.slane %v1219, 3
  %v1319 = vsel %vm517, %v1314, %v1318
  %v1320 = vrot.slane %v1221, 3
  %v1321 = vsel %vm517, %v1316, %v1320
  %v1322 = vrot.slane %v1223, 3
  %v1323 = vsel %vm517, %v1318, %v1322
  %v1324 = vrot.slane %v1236, 3
  %v1325 = vsel %vm517, %v1320, %v1324
  %v1326 = vrot.slane %v1237, 3
  %v1327 = vsel %vm517, %v1322, %v1326
  %v1336 = vadd.f32 %v1302, %v1312
  %v1337 = vadd.f32 %v1303, %v1315
  %v1338 = vadd.f32 %v1304, %v1317
  %v1339 = vadd.f32 %v1305, %v1319
  %v1340 = vadd.f32 %v1306, %v1321
  %v1341 = vadd.f32 %v1307, %v1323
  %v1342 = vadd.f32 %v1308, %v1325
  %v1343 = vadd.f32 %v1309, %v1327
  %v1344 = vrot.slane %v1234, 4
  %v1345 = vrot.slane %v1213, 4
  %v1346 = vsel %vm39, %v1344, %v1345
  %v1347 = vrot.slane %v1235, 4
  %v1348 = vrot.slane %v1215, 4
  %v1349 = vsel %vm39, %v1347, %v1348
  %v1350 = vrot.slane %v1217, 4
  %v1351 = vsel %vm39, %v1345, %v1350
  %v1352 = vrot.slane %v1219, 4
  %v1353 = vsel %vm39, %v1348, %v1352
  %v1354 = vrot.slane %v1221, 4
  %v1355 = vsel %vm39, %v1350, %v1354
  %v1356 = vrot.slane %v1223, 4
  %v1357 = vsel %vm39, %v1352, %v1356
  %v1358 = vrot.slane %v1236, 4
  %v1359 = vsel %vm39, %v1354, %v1358
  %v1360 = vrot.slane %v1237, 4
  %v1361 = vsel %vm39, %v1356, %v1360
  %v1370 = vadd.f32 %v1336, %v1346
  %v1371 = vadd.f32 %v1337, %v1349
  %v1372 = vadd.f32 %v1338, %v1351
  %v1373 = vadd.f32 %v1339, %v1353
  %v1374 = vadd.f32 %v1340, %v1355
  %v1375 = vadd.f32 %v1341, %v1357
  %v1376 = vadd.f32 %v1342, %v1359
  %v1377 = vadd.f32 %v1343, %v1361
  %v1378 = vmul.f32 %v1370, 4e-05
  %v1379 = vmul.f32 %v1371, 4e-05
  %v1380 = vmul.f32 %v1372, 4e-05
  %v1381 = vmul.f32 %v1373, 4e-05
  %v1382 = vmul.f32 %v1374, 4e-05
  %v1383 = vmul.f32 %v1375, 4e-05
  %v1384 = vmul.f32 %v1376, 4e-05
  %v1385 = vmul.f32 %v1377, 4e-05
  %v1386 = vadd.f32 %v1378, 1.0
  %v1387 = vadd.f32 %v1379, 1.0
  %v1388 = vadd.f32 %v1380, 1.0
  %v1389 = vadd.f32 %v1381, 1.0
  %v1390 = vadd.f32 %v1382, 1.0
  %v1391 = vadd.f32 %v1383, 1.0
  %v1392 = vadd.f32 %v1384, 1.0
  %v1393 = vadd.f32 %v1385, 1.0
  %v1394 = vrsqrt.pop %v1386
  %v1395 = vmul.f32 %v1386, %v1394
  %vm1396 = vcmp.eq.f32.partialorder %v1386, inf
  %v1397 = vsel %vm1396, %v1386, %v1395
  %vm1398 = vcmp.eq.f32.partialorder %v1386, 0.0
  %v1399 = vand.u32 %v1386, 2147483648
  %v1400 = vsel %vm1398, %v1399, %v1397
  %v1401 = vrsqrt.pop %v1387
  %v1402 = vmul.f32 %v1387, %v1401
  %vm1403 = vcmp.eq.f32.partialorder %v1387, inf
  %v1404 = vsel %vm1403, %v1387, %v1402
  %vm1405 = vcmp.eq.f32.partialorder %v1387, 0.0
  %v1406 = vand.u32 %v1387, 2147483648
  %v1407 = vsel %vm1405, %v1406, %v1404
  %v1408 = vrsqrt.pop %v1388
  %v1409 = vmul.f32 %v1388, %v1408
  %vm1410 = vcmp.eq.f32.partialorder %v1388, inf
  %v1411 = vsel %vm1410, %v1388, %v1409
  %vm1412 = vcmp.eq.f32.partialorder %v1388, 0.0
  %v1413 = vand.u32 %v1388, 2147483648
  %v1414 = vsel %vm1412, %v1413, %v1411
  %v1415 = vrsqrt.pop %v1389
  %v1416 = vmul.f32 %v1389, %v1415
  %vm1417 = vcmp.eq.f32.partialorder %v1389, inf
  %v1418 = vsel %vm1417, %v1389, %v1416
  %vm1419 = vcmp.eq.f32.partialorder %v1389, 0.0
  %v1420 = vand.u32 %v1389, 2147483648
  %v1421 = vsel %vm1419, %v1420, %v1418
  %v1422 = vrsqrt.pop %v1390
  %v1423 = vmul.f32 %v1390, %v1422
  %vm1424 = vcmp.eq.f32.partialorder %v1390, inf
  %v1425 = vsel %vm1424, %v1390, %v1423
  %vm1426 = vcmp.eq.f32.partialorder %v1390, 0.0
  %v1427 = vand.u32 %v1390, 2147483648
  %v1428 = vsel %vm1426, %v1427, %v1425
  %v1429 = vrsqrt.pop %v1391
  %v1430 = vmul.f32 %v1391, %v1429
  %vm1431 = vcmp.eq.f32.partialorder %v1391, inf
  %v1432 = vsel %vm1431, %v1391, %v1430
  %vm1433 = vcmp.eq.f32.partialorder %v1391, 0.0
  %v1434 = vand.u32 %v1391, 2147483648
  %v1435 = vsel %vm1433, %v1434, %v1432
  %v1436 = vrsqrt.pop %v1392
  %v1437 = vmul.f32 %v1392, %v1436
  %vm1438 = vcmp.eq.f32.partialorder %v1392, inf
  %v1439 = vsel %vm1438, %v1392, %v1437
  %vm1440 = vcmp.eq.f32.partialorder %v1392, 0.0
  %v1441 = vand.u32 %v1392, 2147483648
  %v1442 = vsel %vm1440, %v1441, %v1439
  %v1443 = vrsqrt.pop %v1393
  %v1444 = vmul.f32 %v1393, %v1443
  %vm1445 = vcmp.eq.f32.partialorder %v1393, inf
  %v1446 = vsel %vm1445, %v1393, %v1444
  %vm1447 = vcmp.eq.f32.partialorder %v1393, 0.0
  %v1448 = vand.u32 %v1393, 2147483648
  %v1449 = vsel %vm1447, %v1448, %v1446
  %v1450 = vmul.f32 %v1386, %v1400
  %v1451 = vmul.f32 %v1387, %v1407
  %v1452 = vmul.f32 %v1388, %v1414
  %v1453 = vmul.f32 %v1389, %v1421
  %v1454 = vmul.f32 %v1390, %v1428
  %v1455 = vmul.f32 %v1391, %v1435
  %v1456 = vmul.f32 %v1392, %v1442
  %v1457 = vmul.f32 %v1393, %v1449
  %v1458 = vrsqrt.pop %v1450
  %v1459 = vrsqrt.pop %v1451
  %v1460 = vrsqrt.pop %v1452
  %v1461 = vrsqrt.pop %v1453
  %v1462 = vrsqrt.pop %v1454
  %v1463 = vrsqrt.pop %v1455
  %v1464 = vrsqrt.pop %v1456
  %v1465 = vrsqrt.pop %v1457
  %v1466 = vmul.f32 %v1186, %v1458
  %v1467 = vmul.f32 %v1187, %v1459
  %v1468 = vmul.f32 %v1188, %v1460
  %v1469 = vmul.f32 %v1189, %v1461
  %v1470 = vmul.f32 %v1190, %v1462
  %v1471 = vmul.f32 %v1191, %v1463
  %v1472 = vmul.f32 %v1192, %v1464
  %v1473 = vmul.f32 %v1193, %v1465
  %1482 = vrot.lane.b32.xlu0 %v1466, 120
  %v1483 = vpop.permute.xlu0 %1482
  %1484 = vrot.lane.b32.xlu0 %v1467, 120
  %v1485 = vpop.permute.xlu0 %1484
  %1486 = vrot.lane.b32.xlu0 %v1468, 120
  %v1487 = vpop.permute.xlu0 %1486
  %1488 = vrot.lane.b32.xlu0 %v1469, 120
  %v1489 = vpop.permute.xlu0 %1488
  %1490 = vrot.lane.b32.xlu0 %v1470, 120
  %v1491 = vpop.permute.xlu0 %1490
  %1492 = vrot.lane.b32.xlu0 %v1471, 120
  %v1493 = vpop.permute.xlu0 %1492
  %1494 = vrot.lane.b32.xlu0 %v1472, 120
  %v1495 = vpop.permute.xlu0 %1494
  %1496 = vrot.lane.b32.xlu0 %v1473, 120
  %v1497 = vpop.permute.xlu0 %1496
  %v1498 = vsel %vm738, %v1483, %v1485
  %v1499 = vsel %vm738, %v1487, %v1489
  %v1500 = vsel %vm738, %v1491, %v1493
  %v1501 = vsel %vm738, %v1495, %v1497
  %v1510 = vsel %vm738, %v1485, 0.0
  %v1511 = vsel %vm738, %v1489, 0.0
  %v1512 = vsel %vm738, %v1493, 0.0
  %v1513 = vsel %vm738, %v1497, 0.0
  %1514 = vrot.lane.b32.xlu0 %v1466, 112
  %v1515 = vpop.permute.xlu0 %1514
  %1516 = vrot.lane.b32.xlu0 %v1467, 112
  %v1517 = vpop.permute.xlu0 %1516
  %1518 = vrot.lane.b32.xlu0 %v1468, 112
  %v1519 = vpop.permute.xlu0 %1518
  %1520 = vrot.lane.b32.xlu0 %v1469, 112
  %v1521 = vpop.permute.xlu0 %1520
  %1522 = vrot.lane.b32.xlu0 %v1470, 112
  %v1523 = vpop.permute.xlu0 %1522
  %1524 = vrot.lane.b32.xlu0 %v1471, 112
  %v1525 = vpop.permute.xlu0 %1524
  %1526 = vrot.lane.b32.xlu0 %v1472, 112
  %v1527 = vpop.permute.xlu0 %1526
  %1528 = vrot.lane.b32.xlu0 %v1473, 112
  %v1529 = vpop.permute.xlu0 %1528
  %v1530 = vsel %vm1038, %v1515, %v1517
  %v1531 = vsel %vm1038, %v1519, %v1521
  %v1532 = vsel %vm1038, %v1523, %v1525
  %v1533 = vsel %vm1038, %v1527, %v1529
  %v1542 = vsel %vm1038, %v1517, 0.0
  %v1543 = vsel %vm1038, %v1521, 0.0
  %v1544 = vsel %vm1038, %v1525, 0.0
  %v1545 = vsel %vm1038, %v1529, 0.0
  %s1546 = scalar_lea.vmem %s1, 128
  %v1547 = vld [vmem:[%s1546] sm:$0xff]
  %v1548 = vld [vmem:[%s1546 + $0x8] sm:$0xff]
  %v1549 = vld [vmem:[%s1546 + $0x10] sm:$0xff]
  %v1550 = vld [vmem:[%s1546 + $0x18] sm:$0xff]
  %s1551 = scalar_lea.vmem %s2, 128
  %v1552 = vld [vmem:[%s1551] sm:$0xff]
  %v1553 = vld [vmem:[%s1551 + $0x8] sm:$0xff]
  %v1554 = vld [vmem:[%s1551 + $0x10] sm:$0xff]
  %v1555 = vld [vmem:[%s1551 + $0x18] sm:$0xff]
  %1557 = vset.pattern.permute.xlu0 0
  %1558 = vperm.xlu0 %1557, %v1552
  %v1559 = vpop.permute.xlu0 %1558
  %1562 = vset.pattern.permute.xlu0 0
  %1563 = vperm.xlu0 %1562, %v1553
  %v1564 = vpop.permute.xlu0 %1563
  %1567 = vset.pattern.permute.xlu0 0
  %1568 = vperm.xlu0 %1567, %v1554
  %v1569 = vpop.permute.xlu0 %1568
  %1572 = vset.pattern.permute.xlu0 0
  %1573 = vperm.xlu0 %1572, %v1555
  %v1574 = vpop.permute.xlu0 %1573
  %v1577 = vsel %vm288, %v1547, 0
  %v1580 = vsel %vm288, %v1548, 0
  %v1583 = vsel %vm288, %v1549, 0
  %v1586 = vsel %vm288, %v1550, 0
  %1588 = vmatprep.subr.mxu0 %v1467
  %1589 = vmatpush1.msra.mxu0 %v1466
  %1590 = vmatprep.subr.mxu0 %v1469
  %1591 = vmatpush1.msra.mxu0 %v1468
  %1592 = vmatprep.subr.mxu0 %v1471
  %1593 = vmatpush1.msra.mxu0 %v1470
  %1594 = vmatprep.subr.mxu0 %v1473
  %1595 = vmatpush1.msra.mxu0 %v1472
  %1596 = vmatprep.subr.mxu0 %v1510
  %1597 = vmatpush1.msra.mxu0 %v1498
  %1598 = vmatprep.subr.mxu0 %v1511
  %1599 = vmatpush1.msra.mxu0 %v1499
  %1600 = vmatprep.subr.mxu0 %v1512
  %1601 = vmatpush1.msra.mxu0 %v1500
  %1602 = vmatprep.subr.mxu0 %v1513
  %1603 = vmatpush1.msra.mxu0 %v1501
  %1604 = vmatprep.subr.mxu0 %v1542
  %1605 = vmatpush1.msra.mxu0 %v1530
  %1606 = vmatprep.subr.mxu0 %v1543
  %1607 = vmatpush1.msra.mxu0 %v1531
  %1608 = vmatprep.subr.mxu0 %v1544
  %1609 = vmatpush1.msra.mxu0 %v1532
  %1610 = vmatprep.subr.mxu0 %v1545
  %1611 = vmatpush1.msra.mxu0 %v1533
  %1612 = vmatprep.subr.mxu0 0.0
  %1613 = vmatpush1.msra.mxu0 0.0
  %1614 = vmatprep.subr.mxu0 0.0
  %1615 = vmatpush1.msra.mxu0 0.0
  %1616 = vmatprep.subr.mxu0 0.0
  %1617 = vmatpush1.msra.mxu0 0.0
  %1618 = vmatprep.subr.mxu0 0.0
  %1619 = vmatpush1.msra.mxu0 0.0
  %1620 = vmatprep.subr.mxu0 0.0
  %1621 = vmatpush1.msra.mxu0 0.0
  %1622 = vmatprep.subr.mxu0 0.0
  %1623 = vmatpush1.msra.mxu0 0.0
  %1624 = vmatprep.subr.mxu0 0.0
  %1625 = vmatpush1.msra.mxu0 0.0
  %1626 = vmatprep.subr.mxu0 0.0
  %1627 = vmatpush1.msra.mxu0 0.0
  %1628 = vmatprep.subr.mxu0 0.0
  %1629 = vmatpush1.msra.mxu0 0.0
  %1630 = vmatprep.subr.mxu0 0.0
  %1631 = vmatpush1.msra.mxu0 0.0
  %1632 = vmatprep.subr.mxu0 0.0
  %1633 = vmatpush1.msra.mxu0 0.0
  %1634 = vmatprep.subr.mxu0 0.0
  %1635 = vmatpush1.msra.mxu0 0.0
  %1636 = vmatprep.subr.mxu0 0.0
  %1637 = vmatpush1.msra.mxu0 0.0
  %1638 = vmatprep.subr.mxu0 0.0
  %1639 = vmatpush1.msra.mxu0 0.0
  %1640 = vmatprep.subr.mxu0 0.0
  %1641 = vmatpush1.msra.mxu0 0.0
  %1642 = vmatprep.subr.mxu0 0.0
  %1643 = vmatpush1.msra.mxu0 0.0
  %1644 = vmatprep.subr.mxu0 0.0
  %1645 = vmatpush1.msra.mxu0 0.0
  %1646 = vmatprep.subr.mxu0 0.0
  %1647 = vmatpush1.msra.mxu0 0.0
  %1648 = vmatprep.subr.mxu0 0.0
  %1649 = vmatpush1.msra.mxu0 0.0
  %1650 = vmatprep.subr.mxu0 0.0
  %1651 = vmatpush1.msra.mxu0 0.0
  %1652 = vmatprep.mubr.f32.mxu0 0.0
  %1653 = vmatmul.mubr.f32.gmra.mrb[0].mxu0 %v1577
  %v1654 = vpop.f32.mrb[0].mxu0
  %v1655 = vadd.f32 %v1559, %v1654
  %v1656 = vpop.f32.mrb[0].mxu0
  %v1657 = vadd.f32 %v1559, %v1656
  %1658 = vmatprep.mubr.f32.mxu0 0.0
  %1659 = vmatmul.mubr.f32.gmra.mrb[0].mxu0 %v1580
  %v1660 = vpop.f32.mrb[0].mxu0
  %v1661 = vadd.f32 %v1564, %v1660
  %v1662 = vpop.f32.mrb[0].mxu0
  %v1663 = vadd.f32 %v1564, %v1662
  %1664 = vmatprep.mubr.f32.mxu0 0.0
  %1665 = vmatmul.mubr.f32.gmra.mrb[0].mxu0 %v1583
  %v1666 = vpop.f32.mrb[0].mxu0
  %v1667 = vadd.f32 %v1569, %v1666
  %v1668 = vpop.f32.mrb[0].mxu0
  %v1669 = vadd.f32 %v1569, %v1668
  %1670 = vmatprep.mubr.f32.mxu0 0.0
  %1671 = vmatmul.mubr.f32.gmra.mrb[0].mxu0 %v1586
  %v1672 = vpop.f32.mrb[0].mxu0
  %v1673 = vadd.f32 %v1574, %v1672
  %v1674 = vpop.f32.mrb[0].mxu0
  %v1675 = vadd.f32 %v1574, %v1674
  %1676 = vdwg.mxu0
  %v1677 = vmax.f32 %v1655, 0.0
  %v1678 = vmax.f32 %v1657, 0.0
  %v1679 = vmax.f32 %v1661, 0.0
  %v1680 = vmax.f32 %v1663, 0.0
  %v1681 = vmax.f32 %v1667, 0.0
  %v1682 = vmax.f32 %v1669, 0.0
  %v1683 = vmax.f32 %v1673, 0.0
  %v1684 = vmax.f32 %v1675, 0.0
  %1693 = vrot.lane.b32.xlu0 %v1677, 120
  %v1694 = vpop.permute.xlu0 %1693
  %1695 = vrot.lane.b32.xlu0 %v1678, 120
  %v1696 = vpop.permute.xlu0 %1695
  %1697 = vrot.lane.b32.xlu0 %v1679, 120
  %v1698 = vpop.permute.xlu0 %1697
  %1699 = vrot.lane.b32.xlu0 %v1680, 120
  %v1700 = vpop.permute.xlu0 %1699
  %1701 = vrot.lane.b32.xlu0 %v1681, 120
  %v1702 = vpop.permute.xlu0 %1701
  %1703 = vrot.lane.b32.xlu0 %v1682, 120
  %v1704 = vpop.permute.xlu0 %1703
  %1705 = vrot.lane.b32.xlu0 %v1683, 120
  %v1706 = vpop.permute.xlu0 %1705
  %1707 = vrot.lane.b32.xlu0 %v1684, 120
  %v1708 = vpop.permute.xlu0 %1707
  %v1709 = vsel %vm738, %v1694, %v1696
  %v1710 = vsel %vm738, %v1698, %v1700
  %v1711 = vsel %vm738, %v1702, %v1704
  %v1712 = vsel %vm738, %v1706, %v1708
  %v1721 = vsel %vm738, %v1696, 0.0
  %v1722 = vsel %vm738, %v1700, 0.0
  %v1723 = vsel %vm738, %v1704, 0.0
  %v1724 = vsel %vm738, %v1708, 0.0
  %1725 = vrot.lane.b32.xlu0 %v1677, 112
  %v1726 = vpop.permute.xlu0 %1725
  %1727 = vrot.lane.b32.xlu0 %v1678, 112
  %v1728 = vpop.permute.xlu0 %1727
  %1729 = vrot.lane.b32.xlu0 %v1679, 112
  %v1730 = vpop.permute.xlu0 %1729
  %1731 = vrot.lane.b32.xlu0 %v1680, 112
  %v1732 = vpop.permute.xlu0 %1731
  %1733 = vrot.lane.b32.xlu0 %v1681, 112
  %v1734 = vpop.permute.xlu0 %1733
  %1735 = vrot.lane.b32.xlu0 %v1682, 112
  %v1736 = vpop.permute.xlu0 %1735
  %1737 = vrot.lane.b32.xlu0 %v1683, 112
  %v1738 = vpop.permute.xlu0 %1737
  %1739 = vrot.lane.b32.xlu0 %v1684, 112
  %v1740 = vpop.permute.xlu0 %1739
  %v1741 = vsel %vm1038, %v1726, %v1728
  %v1742 = vsel %vm1038, %v1730, %v1732
  %v1743 = vsel %vm1038, %v1734, %v1736
  %v1744 = vsel %vm1038, %v1738, %v1740
  %v1753 = vsel %vm1038, %v1728, 0.0
  %v1754 = vsel %vm1038, %v1732, 0.0
  %v1755 = vsel %vm1038, %v1736, 0.0
  %v1756 = vsel %vm1038, %v1740, 0.0
  %s1757 = scalar_lea.vmem %s1, 160
  %v1758 = vld [vmem:[%s1757] sm:$0xff]
  %v1759 = vld [vmem:[%s1757 + $0x8] sm:$0xff]
  %v1760 = vld [vmem:[%s1757 + $0x10] sm:$0xff]
  %v1761 = vld [vmem:[%s1757 + $0x18] sm:$0xff]
  %s1762 = scalar_lea.vmem %s2, 160
  %v1763 = vld [vmem:[%s1762] sm:$0xff]
  %v1764 = vld [vmem:[%s1762 + $0x8] sm:$0xff]
  %v1765 = vld [vmem:[%s1762 + $0x10] sm:$0xff]
  %v1766 = vld [vmem:[%s1762 + $0x18] sm:$0xff]
  %1768 = vset.pattern.permute.xlu0 0
  %1769 = vperm.xlu0 %1768, %v1763
  %v1770 = vpop.permute.xlu0 %1769
  %1773 = vset.pattern.permute.xlu0 0
  %1774 = vperm.xlu0 %1773, %v1764
  %v1775 = vpop.permute.xlu0 %1774
  %1778 = vset.pattern.permute.xlu0 0
  %1779 = vperm.xlu0 %1778, %v1765
  %v1780 = vpop.permute.xlu0 %1779
  %1783 = vset.pattern.permute.xlu0 0
  %1784 = vperm.xlu0 %1783, %v1766
  %v1785 = vpop.permute.xlu0 %1784
  %v1788 = vsel %vm288, %v1758, 0
  %v1791 = vsel %vm288, %v1759, 0
  %v1794 = vsel %vm288, %v1760, 0
  %v1797 = vsel %vm288, %v1761, 0
  %1799 = vmatprep.subr.mxu0 %v1678
  %1800 = vmatpush1.msra.mxu0 %v1677
  %1801 = vmatprep.subr.mxu0 %v1680
  %1802 = vmatpush1.msra.mxu0 %v1679
  %1803 = vmatprep.subr.mxu0 %v1682
  %1804 = vmatpush1.msra.mxu0 %v1681
  %1805 = vmatprep.subr.mxu0 %v1684
  %1806 = vmatpush1.msra.mxu0 %v1683
  %1807 = vmatprep.subr.mxu0 %v1721
  %1808 = vmatpush1.msra.mxu0 %v1709
  %1809 = vmatprep.subr.mxu0 %v1722
  %1810 = vmatpush1.msra.mxu0 %v1710
  %1811 = vmatprep.subr.mxu0 %v1723
  %1812 = vmatpush1.msra.mxu0 %v1711
  %1813 = vmatprep.subr.mxu0 %v1724
  %1814 = vmatpush1.msra.mxu0 %v1712
  %1815 = vmatprep.subr.mxu0 %v1753
  %1816 = vmatpush1.msra.mxu0 %v1741
  %1817 = vmatprep.subr.mxu0 %v1754
  %1818 = vmatpush1.msra.mxu0 %v1742
  %1819 = vmatprep.subr.mxu0 %v1755
  %1820 = vmatpush1.msra.mxu0 %v1743
  %1821 = vmatprep.subr.mxu0 %v1756
  %1822 = vmatpush1.msra.mxu0 %v1744
  %1823 = vmatprep.subr.mxu0 0.0
  %1824 = vmatpush1.msra.mxu0 0.0
  %1825 = vmatprep.subr.mxu0 0.0
  %1826 = vmatpush1.msra.mxu0 0.0
  %1827 = vmatprep.subr.mxu0 0.0
  %1828 = vmatpush1.msra.mxu0 0.0
  %1829 = vmatprep.subr.mxu0 0.0
  %1830 = vmatpush1.msra.mxu0 0.0
  %1831 = vmatprep.subr.mxu0 0.0
  %1832 = vmatpush1.msra.mxu0 0.0
  %1833 = vmatprep.subr.mxu0 0.0
  %1834 = vmatpush1.msra.mxu0 0.0
  %1835 = vmatprep.subr.mxu0 0.0
  %1836 = vmatpush1.msra.mxu0 0.0
  %1837 = vmatprep.subr.mxu0 0.0
  %1838 = vmatpush1.msra.mxu0 0.0
  %1839 = vmatprep.subr.mxu0 0.0
  %1840 = vmatpush1.msra.mxu0 0.0
  %1841 = vmatprep.subr.mxu0 0.0
  %1842 = vmatpush1.msra.mxu0 0.0
  %1843 = vmatprep.subr.mxu0 0.0
  %1844 = vmatpush1.msra.mxu0 0.0
  %1845 = vmatprep.subr.mxu0 0.0
  %1846 = vmatpush1.msra.mxu0 0.0
  %1847 = vmatprep.subr.mxu0 0.0
  %1848 = vmatpush1.msra.mxu0 0.0
  %1849 = vmatprep.subr.mxu0 0.0
  %1850 = vmatpush1.msra.mxu0 0.0
  %1851 = vmatprep.subr.mxu0 0.0
  %1852 = vmatpush1.msra.mxu0 0.0
  %1853 = vmatprep.subr.mxu0 0.0
  %1854 = vmatpush1.msra.mxu0 0.0
  %1855 = vmatprep.subr.mxu0 0.0
  %1856 = vmatpush1.msra.mxu0 0.0
  %1857 = vmatprep.subr.mxu0 0.0
  %1858 = vmatpush1.msra.mxu0 0.0
  %1859 = vmatprep.subr.mxu0 0.0
  %1860 = vmatpush1.msra.mxu0 0.0
  %1861 = vmatprep.subr.mxu0 0.0
  %1862 = vmatpush1.msra.mxu0 0.0
  %1863 = vmatprep.mubr.f32.mxu0 0.0
  %1864 = vmatmul.mubr.f32.gmra.mrb[0].mxu0 %v1788
  %v1865 = vpop.f32.mrb[0].mxu0
  %v1866 = vadd.f32 %v1770, %v1865
  %v1867 = vpop.f32.mrb[0].mxu0
  %v1868 = vadd.f32 %v1770, %v1867
  %1869 = vmatprep.mubr.f32.mxu0 0.0
  %1870 = vmatmul.mubr.f32.gmra.mrb[0].mxu0 %v1791
  %v1871 = vpop.f32.mrb[0].mxu0
  %v1872 = vadd.f32 %v1775, %v1871
  %v1873 = vpop.f32.mrb[0].mxu0
  %v1874 = vadd.f32 %v1775, %v1873
  %1875 = vmatprep.mubr.f32.mxu0 0.0
  %1876 = vmatmul.mubr.f32.gmra.mrb[0].mxu0 %v1794
  %v1877 = vpop.f32.mrb[0].mxu0
  %v1878 = vadd.f32 %v1780, %v1877
  %v1879 = vpop.f32.mrb[0].mxu0
  %v1880 = vadd.f32 %v1780, %v1879
  %1881 = vmatprep.mubr.f32.mxu0 0.0
  %1882 = vmatmul.mubr.f32.gmra.mrb[0].mxu0 %v1797
  %v1883 = vpop.f32.mrb[0].mxu0
  %v1884 = vadd.f32 %v1785, %v1883
  %v1885 = vpop.f32.mrb[0].mxu0
  %v1886 = vadd.f32 %v1785, %v1885
  %1887 = vdwg.mxu0
  %v1888 = vmax.f32 %v1866, 0.0
  %v1889 = vmax.f32 %v1868, 0.0
  %v1890 = vmax.f32 %v1872, 0.0
  %v1891 = vmax.f32 %v1874, 0.0
  %v1892 = vmax.f32 %v1878, 0.0
  %v1893 = vmax.f32 %v1880, 0.0
  %v1894 = vmax.f32 %v1884, 0.0
  %v1895 = vmax.f32 %v1886, 0.0
  %v1896 = vmul.f32 %v1888, %v1888
  %v1897 = vmul.f32 %v1889, %v1889
  %v1898 = vmul.f32 %v1890, %v1890
  %v1899 = vmul.f32 %v1891, %v1891
  %v1900 = vmul.f32 %v1892, %v1892
  %v1901 = vmul.f32 %v1893, %v1893
  %v1902 = vmul.f32 %v1894, %v1894
  %v1903 = vmul.f32 %v1895, %v1895
  %v1912 = vrot.slane %v1896, 6
  %v1913 = vrot.slane %v1897, 6
  %v1914 = vrot.slane %v1898, 6
  %v1915 = vsel %vm414, %v1912, %v1914
  %v1916 = vrot.slane %v1899, 6
  %v1917 = vsel %vm414, %v1913, %v1916
  %v1918 = vrot.slane %v1900, 6
  %v1919 = vsel %vm414, %v1914, %v1918
  %v1920 = vrot.slane %v1901, 6
  %v1921 = vsel %vm414, %v1916, %v1920
  %v1922 = vrot.slane %v1902, 6
  %v1923 = vsel %vm414, %v1918, %v1922
  %v1924 = vrot.slane %v1903, 6
  %v1925 = vsel %vm414, %v1920, %v1924
  %v1936 = vsel %vm414, 0.0, %v1912
  %v1937 = vsel %vm414, 0.0, %v1913
  %v1938 = vsel %vm414, %v1922, 0.0
  %v1939 = vsel %vm414, %v1924, 0.0
  %v1944 = vrot.slane %v1936, 1
  %v1945 = vrot.slane %v1915, 1
  %v1946 = vsel %vm447, %v1944, %v1945
  %v1947 = vrot.slane %v1937, 1
  %v1948 = vrot.slane %v1917, 1
  %v1949 = vsel %vm447, %v1947, %v1948
  %v1950 = vrot.slane %v1919, 1
  %v1951 = vsel %vm447, %v1945, %v1950
  %v1952 = vrot.slane %v1921, 1
  %v1953 = vsel %vm447, %v1948, %v1952
  %v1954 = vrot.slane %v1923, 1
  %v1955 = vsel %vm447, %v1950, %v1954
  %v1956 = vrot.slane %v1925, 1
  %v1957 = vsel %vm447, %v1952, %v1956
  %v1958 = vrot.slane %v1938, 1
  %v1959 = vsel %vm447, %v1954, %v1958
  %v1960 = vrot.slane %v1939, 1
  %v1961 = vsel %vm447, %v1956, %v1960
  %v1970 = vadd.f32 %v1936, %v1946
  %v1971 = vadd.f32 %v1937, %v1949
  %v1972 = vadd.f32 %v1915, %v1951
  %v1973 = vadd.f32 %v1917, %v1953
  %v1974 = vadd.f32 %v1919, %v1955
  %v1975 = vadd.f32 %v1921, %v1957
  %v1976 = vadd.f32 %v1923, %v1959
  %v1977 = vadd.f32 %v1925, %v1961
  %v1978 = vrot.slane %v1936, 2
  %v1979 = vrot.slane %v1915, 2
  %v1980 = vsel %vm482, %v1978, %v1979
  %v1981 = vrot.slane %v1937, 2
  %v1982 = vrot.slane %v1917, 2
  %v1983 = vsel %vm482, %v1981, %v1982
  %v1984 = vrot.slane %v1919, 2
  %v1985 = vsel %vm482, %v1979, %v1984
  %v1986 = vrot.slane %v1921, 2
  %v1987 = vsel %vm482, %v1982, %v1986
  %v1988 = vrot.slane %v1923, 2
  %v1989 = vsel %vm482, %v1984, %v1988
  %v1990 = vrot.slane %v1925, 2
  %v1991 = vsel %vm482, %v1986, %v1990
  %v1992 = vrot.slane %v1938, 2
  %v1993 = vsel %vm482, %v1988, %v1992
  %v1994 = vrot.slane %v1939, 2
  %v1995 = vsel %vm482, %v1990, %v1994
  %v2004 = vadd.f32 %v1970, %v1980
  %v2005 = vadd.f32 %v1971, %v1983
  %v2006 = vadd.f32 %v1972, %v1985
  %v2007 = vadd.f32 %v1973, %v1987
  %v2008 = vadd.f32 %v1974, %v1989
  %v2009 = vadd.f32 %v1975, %v1991
  %v2010 = vadd.f32 %v1976, %v1993
  %v2011 = vadd.f32 %v1977, %v1995
  %v2012 = vrot.slane %v1936, 3
  %v2013 = vrot.slane %v1915, 3
  %v2014 = vsel %vm517, %v2012, %v2013
  %v2015 = vrot.slane %v1937, 3
  %v2016 = vrot.slane %v1917, 3
  %v2017 = vsel %vm517, %v2015, %v2016
  %v2018 = vrot.slane %v1919, 3
  %v2019 = vsel %vm517, %v2013, %v2018
  %v2020 = vrot.slane %v1921, 3
  %v2021 = vsel %vm517, %v2016, %v2020
  %v2022 = vrot.slane %v1923, 3
  %v2023 = vsel %vm517, %v2018, %v2022
  %v2024 = vrot.slane %v1925, 3
  %v2025 = vsel %vm517, %v2020, %v2024
  %v2026 = vrot.slane %v1938, 3
  %v2027 = vsel %vm517, %v2022, %v2026
  %v2028 = vrot.slane %v1939, 3
  %v2029 = vsel %vm517, %v2024, %v2028
  %v2038 = vadd.f32 %v2004, %v2014
  %v2039 = vadd.f32 %v2005, %v2017
  %v2040 = vadd.f32 %v2006, %v2019
  %v2041 = vadd.f32 %v2007, %v2021
  %v2042 = vadd.f32 %v2008, %v2023
  %v2043 = vadd.f32 %v2009, %v2025
  %v2044 = vadd.f32 %v2010, %v2027
  %v2045 = vadd.f32 %v2011, %v2029
  %v2046 = vrot.slane %v1936, 4
  %v2047 = vrot.slane %v1915, 4
  %v2048 = vsel %vm39, %v2046, %v2047
  %v2049 = vrot.slane %v1937, 4
  %v2050 = vrot.slane %v1917, 4
  %v2051 = vsel %vm39, %v2049, %v2050
  %v2052 = vrot.slane %v1919, 4
  %v2053 = vsel %vm39, %v2047, %v2052
  %v2054 = vrot.slane %v1921, 4
  %v2055 = vsel %vm39, %v2050, %v2054
  %v2056 = vrot.slane %v1923, 4
  %v2057 = vsel %vm39, %v2052, %v2056
  %v2058 = vrot.slane %v1925, 4
  %v2059 = vsel %vm39, %v2054, %v2058
  %v2060 = vrot.slane %v1938, 4
  %v2061 = vsel %vm39, %v2056, %v2060
  %v2062 = vrot.slane %v1939, 4
  %v2063 = vsel %vm39, %v2058, %v2062
  %v2072 = vadd.f32 %v2038, %v2048
  %v2073 = vadd.f32 %v2039, %v2051
  %v2074 = vadd.f32 %v2040, %v2053
  %v2075 = vadd.f32 %v2041, %v2055
  %v2076 = vadd.f32 %v2042, %v2057
  %v2077 = vadd.f32 %v2043, %v2059
  %v2078 = vadd.f32 %v2044, %v2061
  %v2079 = vadd.f32 %v2045, %v2063
  %v2080 = vmul.f32 %v2072, 4e-05
  %v2081 = vmul.f32 %v2073, 4e-05
  %v2082 = vmul.f32 %v2074, 4e-05
  %v2083 = vmul.f32 %v2075, 4e-05
  %v2084 = vmul.f32 %v2076, 4e-05
  %v2085 = vmul.f32 %v2077, 4e-05
  %v2086 = vmul.f32 %v2078, 4e-05
  %v2087 = vmul.f32 %v2079, 4e-05
  %v2088 = vadd.f32 %v2080, 1.0
  %v2089 = vadd.f32 %v2081, 1.0
  %v2090 = vadd.f32 %v2082, 1.0
  %v2091 = vadd.f32 %v2083, 1.0
  %v2092 = vadd.f32 %v2084, 1.0
  %v2093 = vadd.f32 %v2085, 1.0
  %v2094 = vadd.f32 %v2086, 1.0
  %v2095 = vadd.f32 %v2087, 1.0
  %v2096 = vrsqrt.pop %v2088
  %v2097 = vmul.f32 %v2088, %v2096
  %vm2098 = vcmp.eq.f32.partialorder %v2088, inf
  %v2099 = vsel %vm2098, %v2088, %v2097
  %vm2100 = vcmp.eq.f32.partialorder %v2088, 0.0
  %v2101 = vand.u32 %v2088, 2147483648
  %v2102 = vsel %vm2100, %v2101, %v2099
  %v2103 = vrsqrt.pop %v2089
  %v2104 = vmul.f32 %v2089, %v2103
  %vm2105 = vcmp.eq.f32.partialorder %v2089, inf
  %v2106 = vsel %vm2105, %v2089, %v2104
  %vm2107 = vcmp.eq.f32.partialorder %v2089, 0.0
  %v2108 = vand.u32 %v2089, 2147483648
  %v2109 = vsel %vm2107, %v2108, %v2106
  %v2110 = vrsqrt.pop %v2090
  %v2111 = vmul.f32 %v2090, %v2110
  %vm2112 = vcmp.eq.f32.partialorder %v2090, inf
  %v2113 = vsel %vm2112, %v2090, %v2111
  %vm2114 = vcmp.eq.f32.partialorder %v2090, 0.0
  %v2115 = vand.u32 %v2090, 2147483648
  %v2116 = vsel %vm2114, %v2115, %v2113
  %v2117 = vrsqrt.pop %v2091
  %v2118 = vmul.f32 %v2091, %v2117
  %vm2119 = vcmp.eq.f32.partialorder %v2091, inf
  %v2120 = vsel %vm2119, %v2091, %v2118
  %vm2121 = vcmp.eq.f32.partialorder %v2091, 0.0
  %v2122 = vand.u32 %v2091, 2147483648
  %v2123 = vsel %vm2121, %v2122, %v2120
  %v2124 = vrsqrt.pop %v2092
  %v2125 = vmul.f32 %v2092, %v2124
  %vm2126 = vcmp.eq.f32.partialorder %v2092, inf
  %v2127 = vsel %vm2126, %v2092, %v2125
  %vm2128 = vcmp.eq.f32.partialorder %v2092, 0.0
  %v2129 = vand.u32 %v2092, 2147483648
  %v2130 = vsel %vm2128, %v2129, %v2127
  %v2131 = vrsqrt.pop %v2093
  %v2132 = vmul.f32 %v2093, %v2131
  %vm2133 = vcmp.eq.f32.partialorder %v2093, inf
  %v2134 = vsel %vm2133, %v2093, %v2132
  %vm2135 = vcmp.eq.f32.partialorder %v2093, 0.0
  %v2136 = vand.u32 %v2093, 2147483648
  %v2137 = vsel %vm2135, %v2136, %v2134
  %v2138 = vrsqrt.pop %v2094
  %v2139 = vmul.f32 %v2094, %v2138
  %vm2140 = vcmp.eq.f32.partialorder %v2094, inf
  %v2141 = vsel %vm2140, %v2094, %v2139
  %vm2142 = vcmp.eq.f32.partialorder %v2094, 0.0
  %v2143 = vand.u32 %v2094, 2147483648
  %v2144 = vsel %vm2142, %v2143, %v2141
  %v2145 = vrsqrt.pop %v2095
  %v2146 = vmul.f32 %v2095, %v2145
  %vm2147 = vcmp.eq.f32.partialorder %v2095, inf
  %v2148 = vsel %vm2147, %v2095, %v2146
  %vm2149 = vcmp.eq.f32.partialorder %v2095, 0.0
  %v2150 = vand.u32 %v2095, 2147483648
  %v2151 = vsel %vm2149, %v2150, %v2148
  %v2152 = vmul.f32 %v2088, %v2102
  %v2153 = vmul.f32 %v2089, %v2109
  %v2154 = vmul.f32 %v2090, %v2116
  %v2155 = vmul.f32 %v2091, %v2123
  %v2156 = vmul.f32 %v2092, %v2130
  %v2157 = vmul.f32 %v2093, %v2137
  %v2158 = vmul.f32 %v2094, %v2144
  %v2159 = vmul.f32 %v2095, %v2151
  %v2160 = vrsqrt.pop %v2152
  %v2161 = vrsqrt.pop %v2153
  %v2162 = vrsqrt.pop %v2154
  %v2163 = vrsqrt.pop %v2155
  %v2164 = vrsqrt.pop %v2156
  %v2165 = vrsqrt.pop %v2157
  %v2166 = vrsqrt.pop %v2158
  %v2167 = vrsqrt.pop %v2159
  %v2168 = vmul.f32 %v1888, %v2160
  %v2169 = vmul.f32 %v1889, %v2161
  %v2170 = vmul.f32 %v1890, %v2162
  %v2171 = vmul.f32 %v1891, %v2163
  %v2172 = vmul.f32 %v1892, %v2164
  %v2173 = vmul.f32 %v1893, %v2165
  %v2174 = vmul.f32 %v1894, %v2166
  %v2175 = vmul.f32 %v1895, %v2167
  %2176 = vst [vmem:[%s3] sm:$0xff] %v2168
  %2177 = vst [vmem:[%s3 + $0x8] sm:$0xff] %v2169
  %2178 = vst [vmem:[%s3 + $0x10] sm:$0xff] %v2170
  %2179 = vst [vmem:[%s3 + $0x18] sm:$0xff] %v2171
  %2180 = vst [vmem:[%s3 + $0x20] sm:$0xff] %v2172
  %2181 = vst [vmem:[%s3 + $0x28] sm:$0xff] %v2173
  %2182 = vst [vmem:[%s3 + $0x30] sm:$0xff] %v2174
  %2183 = vst [vmem:[%s3 + $0x38] sm:$0xff] %v2175
  // Predicated region
  $region14: #{_forward_impl.1} parent=0 // pred_check
    _
  $region15: #{_forward_impl.1} parent=0 // pred_check_branch
    %2185 = sbr.rel (0) target = $region17
  $region16: #{_forward_impl.1} parent=0 // pred_region
    _
  $region17: #{_forward_impl.1} parent=0 // pred_fallthru
    _
  // Predicated region
  $region18: #{_forward_impl.1} parent=0 // pred_check
    _
  $region19: #{_forward_impl.1} parent=0 // pred_check_branch
    %2187 = sbr.rel (0) target = $region21
  $region20: #{_forward_impl.1} parent=0 // pred_region
    _
  $region21: #{_forward_impl.1} parent=0 // pred_fallthru
    _

</llo_original>
